<compile_context>
chip_gen: v7x
topology: tpu7x:2x2x1
jax: 0.10.0
libtpu: 0.0.40
codegen_flags: <defaults>
</compile_context>

<pallas_src>
import jax
import jax.numpy as jnp
from jax import lax
from jax.experimental import pallas as pl
from jax.experimental.pallas import tpu as pltpu


def sanet_kernel(c_ref, s_ref, wc_ref, bc_ref, ws_ref, bs_ref,
                 facefeat_ref, landmark_ref, projs_ref, acc_ref):
    qi = pl.program_id(1)
    nq = pl.num_programs(1)
    cp = facefeat_ref.shape[1]          # in_planes (static)

    # Style projections G0/Kv are identical for every query tile of a batch
    # element; compute them once (qi == 0) and cache them in VMEM scratch.
    @pl.when(qi == 0)
    def _():
        projs_ref[...] = (
            jnp.dot(ws_ref[...], s_ref[0], preferred_element_type=jnp.float32)
            + bs_ref[...])

    # Fused 1x1-conv projections of the content query tile (f32, lane-dense).
    proj_c = (jnp.dot(wc_ref[...], c_ref[0], preferred_element_type=jnp.float32)
              + bc_ref[...])
    f0 = proj_c[:cp]                    # F0 tile          (Cp, TQ)
    hv = proj_c[cp:]                    # h(content) tile  (Cp, TQ)
    g0 = projs_ref[:cp]                 # G0               (Cp, N)  f32
    kv = projs_ref[cp:]                 # k(style)         (Cp, N)  f32

    # Attention scores S[i, j] = sum_c F0[c, i] * G0[c, j]  (bf16 in, f32 acc).
    s = lax.dot_general(f0.astype(jnp.bfloat16), g0.astype(jnp.bfloat16),
                        (((0,), (0,)), ((), ())),
                        preferred_element_type=jnp.float32)        # (TQ, N)

    # Softmax over j (full key row available per query tile) -- f32 math,
    # reciprocal routed to the EUP slot.
    s = s - jnp.max(s, axis=-1, keepdims=True)
    e = jnp.exp(s)
    p = e * pl.reciprocal(jnp.sum(e, axis=-1, keepdims=True), approx=True)
    pb = p.astype(jnp.bfloat16)

    # enhanced_facefeatures (Landmark_en) tile:
    #   Land[c, i] = sum_j Kv[c, j] * S[i, j]   (+ F0[c, i])
    land = lax.dot_general(kv.astype(jnp.bfloat16), pb,
                           (((1,), (1,)), ((), ())),
                           preferred_element_type=jnp.float32)     # (Cp, TQ)
    facefeat_ref[0] = land + f0

    # enhanced_landmarks (Face_en): Face[c, j] = sum_i Hv[c, i] * S[i, j]
    # -> reduction over query tiles, accumulated in VMEM scratch.
    face_part = jnp.dot(hv.astype(jnp.bfloat16), pb,
                        preferred_element_type=jnp.float32)        # (Cp, N)

    @pl.when(qi == 0)
    def _():
        acc_ref[...] = face_part

    @pl.when(qi > 0)
    def _():
        acc_ref[...] = acc_ref[...] + face_part

    @pl.when(qi == nq - 1)
    def _():
        landmark_ref[0] = acc_ref[...] + g0


def sanet_forward(content, style, params, tq=None):
    """content, style: NCHW float32.

    Returns (enhanced_facefeatures, enhanced_landmarks) in NCHW, matching the
    PyTorch forward() return order.
    """
    B, Cin, H, W = content.shape
    Cp = params["wf"].shape[0]
    N = H * W

    # Query-tile size: largest multiple of 128 (<= 512) dividing N, else N.
    if tq is None:
        tq = N
        if N % 128 == 0:
            for cand in (512, 384, 256, 128):
                if N % cand == 0:
                    tq = cand
                    break
    assert N % tq == 0 and (tq == N or tq % 128 == 0)
    nq = N // tq

    # Channels-first flatten: pure reshape, no transposes around the kernel.
    c_flat = content.reshape(B, Cin, N)
    s_flat = style.reshape(B, Cin, N)

    # Fuse the four 1x1 convs into two (2*Cp, Cin) weight matrices.
    wc = jnp.concatenate([params["wf"].reshape(Cp, Cin),
                          params["wh"].reshape(Cp, Cin)], axis=0)
    bc = jnp.concatenate([params["bf"], params["bh"]], axis=0).reshape(2 * Cp, 1)
    ws = jnp.concatenate([params["wg"].reshape(Cp, Cin),
                          params["wk"].reshape(Cp, Cin)], axis=0)
    bs = jnp.concatenate([params["bg"], params["bk"]], axis=0).reshape(2 * Cp, 1)

    in_specs = [
        pl.BlockSpec((1, Cin, tq), lambda b, q: (b, 0, q)),    # content query tile
        pl.BlockSpec((1, Cin, N), lambda b, q: (b, 0, 0)),     # style (resident per b)
        pl.BlockSpec((2 * Cp, Cin), lambda b, q: (0, 0)),      # fused content weights
        pl.BlockSpec((2 * Cp, 1), lambda b, q: (0, 0)),        # fused content biases
        pl.BlockSpec((2 * Cp, Cin), lambda b, q: (0, 0)),      # fused style weights
        pl.BlockSpec((2 * Cp, 1), lambda b, q: (0, 0)),        # fused style biases
    ]
    out_specs = [
        pl.BlockSpec((1, Cp, tq), lambda b, q: (b, 0, q)),     # enhanced_facefeatures
        pl.BlockSpec((1, Cp, N), lambda b, q: (b, 0, 0)),      # enhanced_landmarks
    ]

    facefeat_flat, landmark_flat = pl.pallas_call(
        sanet_kernel,
        out_shape=(jax.ShapeDtypeStruct((B, Cp, N), jnp.float32),
                   jax.ShapeDtypeStruct((B, Cp, N), jnp.float32)),
        grid_spec=pltpu.PrefetchScalarGridSpec(
            num_scalar_prefetch=0,
            grid=(B, nq),
            in_specs=in_specs,
            out_specs=out_specs,
            scratch_shapes=[
                pltpu.VMEM((2 * Cp, N), jnp.float32),          # cached G0 / Kv
                pltpu.VMEM((Cp, N), jnp.float32),              # Face_en accumulator
            ]),
        compiler_params=pltpu.CompilerParams(
            dimension_semantics=("parallel", "arbitrary"),
            vmem_limit_bytes=32 * 1024 * 1024),
    )(c_flat, s_flat, wc, bc, ws, bs)

    # (B, Cp, N) -> NCHW is a pure reshape in channels-first layout.
    facefeat = facefeat_flat.reshape(B, Cp, H, W)
    landmark = landmark_flat.reshape(B, Cp, H, W)
    return facefeat, landmark


def sanet_reference(content, style, params):
    """Pure-JAX (f32) replica of the PyTorch forward, for verification."""
    B, Cin, H, W = content.shape
    Cp = params["wf"].shape[0]
    N = H * W

    def conv1x1(x, w, b):
        return jnp.einsum('bihw,oi->bohw', x, w.reshape(Cp, Cin)) + b[None, :, None, None]

    F0 = conv1x1(content, params["wf"], params["bf"])
    G0 = conv1x1(style, params["wg"], params["bg"])
    Fm = F0.reshape(B, Cp, N).transpose(0, 2, 1)            # (B, N, C)
    Gm = G0.reshape(B, Cp, N)                               # (B, C, N)
    S = jax.nn.softmax(jnp.einsum('bnc,bcm->bnm', Fm, Gm), axis=-1)
    Hv = conv1x1(content, params["wh"], params["bh"]).reshape(B, Cp, N)
    Face_en = jnp.einsum('bcn,bnm->bcm', Hv, S).reshape(B, Cp, H, W) + G0
    Kv = conv1x1(style, params["wk"], params["bk"]).reshape(B, Cp, N)
    Land_en = jnp.einsum('bcn,bmn->bcm', Kv, S).reshape(B, Cp, H, W) + F0
    return Land_en, Face_en    # (enhanced_facefeatures, enhanced_landmarks)


if __name__ == "__main__":
    # Small but non-trivial: N = 16*16 = 256 pixels.
    B, Cin, Cp, H, W = 2, 4, 8, 16, 16

    key = jax.random.PRNGKey(0)
    keys = jax.random.split(key, 10)
    scale = 0.1
    params = {
        "wf": scale * jax.random.normal(keys[0], (Cp, Cin, 1, 1), jnp.float32),
        "bf": scale * jax.random.normal(keys[1], (Cp,), jnp.float32),
        "wg": scale * jax.random.normal(keys[2], (Cp, Cin, 1, 1), jnp.float32),
        "bg": scale * jax.random.normal(keys[3], (Cp,), jnp.float32),
        "wh": scale * jax.random.normal(keys[4], (Cp, Cin, 1, 1), jnp.float32),
        "bh": scale * jax.random.normal(keys[5], (Cp,), jnp.float32),
        "wk": scale * jax.random.normal(keys[6], (Cp, Cin, 1, 1), jnp.float32),
        "bk": scale * jax.random.normal(keys[7], (Cp,), jnp.float32),
    }
    content = jax.random.normal(keys[8], (B, Cin, H, W), jnp.float32)
    style = jax.random.normal(keys[9], (B, Cin, H, W), jnp.float32)

    ref_facefeat, ref_landmark = sanet_reference(content, style, params)

    # Default tiling (tq = 256 -> single query tile per batch element).
    facefeat, landmark = sanet_forward(content, style, params)
    jax.block_until_ready((facefeat, landmark))
    assert facefeat.shape == (B, Cp, H, W) and landmark.shape == (B, Cp, H, W)
    # Tolerances loosened for bf16 MXU operands + approx reciprocal (softmax
    # math itself stays f32); observed errors are ~1e-3 on values ~0.1-0.5.
    assert jnp.allclose(facefeat, ref_facefeat, rtol=5e-2, atol=1e-2)
    assert jnp.allclose(landmark, ref_landmark, rtol=5e-2, atol=1e-2)

    # Explicit tq=128 (two query tiles) to exercise the style-projection cache
    # plus the Face_en accumulate / finalize path.
    facefeat2, landmark2 = sanet_forward(content, style, params, tq=128)
    jax.block_until_ready((facefeat2, landmark2))
    assert jnp.allclose(facefeat2, ref_facefeat, rtol=5e-2, atol=1e-2)
    assert jnp.allclose(landmark2, ref_landmark, rtol=5e-2, atol=1e-2)

    print("KERNEL_OK")
</pallas_src>

<mosaic_0001>
module attributes {stable_mosaic.version = 11 : i64} {
  func.func @sanet_kernel(%arg0: i32, %arg1: i32, %arg2: memref<1x4x256xf32, #tpu.memory_space<vmem>>, %arg3: memref<1x4x256xf32, #tpu.memory_space<vmem>>, %arg4: memref<16x4xf32, #tpu.memory_space<vmem>>, %arg5: memref<16x1xf32, #tpu.memory_space<vmem>>, %arg6: memref<16x4xf32, #tpu.memory_space<vmem>>, %arg7: memref<16x1xf32, #tpu.memory_space<vmem>>, %arg8: memref<1x8x256xf32, #tpu.memory_space<vmem>>, %arg9: memref<1x8x256xf32, #tpu.memory_space<vmem>>, %arg10: memref<16x256xf32, #tpu.memory_space<vmem>>, %arg11: memref<8x256xf32, #tpu.memory_space<vmem>>) attributes {dimension_semantics = [#tpu.dimension_semantics<parallel>, #tpu.dimension_semantics<arbitrary>], iteration_bounds = array<i64: 2, 1>, scalar_prefetch = 0 : i64, scratch_operands = 2 : i64, tpu.core_type = #tpu.core_type<tc>, window_params = [{transform_indices = @transform_0, window_bounds = array<i64: 1, 4, 256>}, {transform_indices = @transform_1, window_bounds = array<i64: 1, 4, 256>}, {pipeline_mode = #tpu.pipeline_mode<synchronous>, transform_indices = @transform_2, window_bounds = array<i64: 16, 4>}, {pipeline_mode = #tpu.pipeline_mode<synchronous>, transform_indices = @transform_3, window_bounds = array<i64: 16, 1>}, {pipeline_mode = #tpu.pipeline_mode<synchronous>, transform_indices = @transform_4, window_bounds = array<i64: 16, 4>}, {pipeline_mode = #tpu.pipeline_mode<synchronous>, transform_indices = @transform_5, window_bounds = array<i64: 16, 1>}, {transform_indices = @transform_6, window_bounds = array<i64: 1, 8, 256>}, {transform_indices = @transform_7, window_bounds = array<i64: 1, 8, 256>}]} {
    %c0_i32 = arith.constant 0 : i32
    %0 = arith.cmpi eq, %arg1, %c0_i32 : i32
    %1 = arith.extui %0 : i1 to i32
    %c0_i32_0 = arith.constant 0 : i32
    %2 = arith.cmpi ne, %1, %c0_i32_0 : i32
    scf.if %2 {
      %c0_24 = arith.constant 0 : index
      %c0_25 = arith.constant 0 : index
      %45 = vector.load %arg6[%c0_24, %c0_25] : memref<16x4xf32, #tpu.memory_space<vmem>>, vector<16x4xf32>
      %c0_26 = arith.constant 0 : index
      %c0_27 = arith.constant 0 : index
      %c0_28 = arith.constant 0 : index
      %46 = vector.load %arg3[%c0_26, %c0_27, %c0_28] : memref<1x4x256xf32, #tpu.memory_space<vmem>>, vector<1x4x256xf32>
      %47 = vector.shape_cast %46 : vector<1x4x256xf32> to vector<4x256xf32>
      %cst_29 = arith.constant dense<0.000000e+00> : vector<16x256xf32>
      %48 = tpu.matmul %45, %47, %cst_29 {dimension_numbers = #tpu.dot_dimension_numbers<[1], [0], [0], [1], [0, 0, 1, 1], [], []>} : vector<16x4xf32>, vector<4x256xf32>, vector<16x256xf32> -> vector<16x256xf32>
      %c0_30 = arith.constant 0 : index
      %c0_31 = arith.constant 0 : index
      %49 = vector.load %arg7[%c0_30, %c0_31] : memref<16x1xf32, #tpu.memory_space<vmem>>, vector<16x1xf32>
      %50 = vector.broadcast %49 : vector<16x1xf32> to vector<16x256xf32>
      %51 = arith.addf %48, %50 : vector<16x256xf32>
      %c0_32 = arith.constant 0 : index
      %c0_33 = arith.constant 0 : index
      %52 = vector.load %arg10[%c0_32, %c0_33] : memref<16x256xf32, #tpu.memory_space<vmem>>, vector<16x256xf32>
      tpu.vector_store %arg10[%c0_32, %c0_33], %51 {strides = array<i32>} : memref<16x256xf32, #tpu.memory_space<vmem>>, vector<16x256xf32>,
    } else {
    }
    %c0 = arith.constant 0 : index
    %c0_1 = arith.constant 0 : index
    %3 = vector.load %arg4[%c0, %c0_1] : memref<16x4xf32, #tpu.memory_space<vmem>>, vector<16x4xf32>
    %c0_2 = arith.constant 0 : index
    %c0_3 = arith.constant 0 : index
    %c0_4 = arith.constant 0 : index
    %4 = vector.load %arg2[%c0_2, %c0_3, %c0_4] : memref<1x4x256xf32, #tpu.memory_space<vmem>>, vector<1x4x256xf32>
    %5 = vector.shape_cast %4 : vector<1x4x256xf32> to vector<4x256xf32>
    %cst = arith.constant dense<0.000000e+00> : vector<16x256xf32>
    %6 = tpu.matmul %3, %5, %cst {dimension_numbers = #tpu.dot_dimension_numbers<[1], [0], [0], [1], [0, 0, 1, 1], [], []>} : vector<16x4xf32>, vector<4x256xf32>, vector<16x256xf32> -> vector<16x256xf32>
    %c0_5 = arith.constant 0 : index
    %c0_6 = arith.constant 0 : index
    %7 = vector.load %arg5[%c0_5, %c0_6] : memref<16x1xf32, #tpu.memory_space<vmem>>, vector<16x1xf32>
    %8 = vector.broadcast %7 : vector<16x1xf32> to vector<16x256xf32>
    %9 = arith.addf %6, %8 : vector<16x256xf32>
    %10 = vector.extract_strided_slice %9 {offsets = [0, 0], sizes = [8, 256], strides = [1, 1]} : vector<16x256xf32> to vector<8x256xf32>
    %11 = vector.extract_strided_slice %9 {offsets = [8, 0], sizes = [8, 256], strides = [1, 1]} : vector<16x256xf32> to vector<8x256xf32>
    %c0_7 = arith.constant 0 : index
    %c0_8 = arith.constant 0 : index
    %12 = vector.load %arg10[%c0_7, %c0_8] : memref<16x256xf32, #tpu.memory_space<vmem>>, vector<8x256xf32>
    %c8 = arith.constant 8 : index
    %c0_9 = arith.constant 0 : index
    %13 = vector.load %arg10[%c8, %c0_9] : memref<16x256xf32, #tpu.memory_space<vmem>>, vector<8x256xf32>
    %14 = arith.truncf %10 : vector<8x256xf32> to vector<8x256xbf16>
    %15 = arith.truncf %12 : vector<8x256xf32> to vector<8x256xbf16>
    %cst_10 = arith.constant dense<0.000000e+00> : vector<256x256xf32>
    %16 = tpu.matmul %14, %15, %cst_10 {dimension_numbers = #tpu.dot_dimension_numbers<[0], [0], [1], [1], [0, 1, 1, 1], [], []>} : vector<8x256xbf16>, vector<8x256xbf16>, vector<256x256xf32> -> vector<256x256xf32>
    %cst_11 = arith.constant dense<0xFF800000> : vector<256xf32>
    %17 = vector.multi_reduction <maximumf>, %16, %cst_11 [1] : vector<256x256xf32> to vector<256xf32>
    %18 = vector.shape_cast %17 : vector<256xf32> to vector<256x1xf32>
    %19 = vector.broadcast %18 : vector<256x1xf32> to vector<256x256xf32>
    %20 = arith.subf %16, %19 : vector<256x256xf32>
    %21 = math.exp %20 : vector<256x256xf32>
    %cst_12 = arith.constant dense<0.000000e+00> : vector<256xf32>
    %22 = vector.multi_reduction <add>, %21, %cst_12 [1] : vector<256x256xf32> to vector<256xf32>
    %23 = vector.shape_cast %22 : vector<256xf32> to vector<256x1xf32>
    %24 = tpu.reciprocal %23 {approx = true} : vector<256x1xf32> -> vector<256x1xf32>
    %25 = vector.broadcast %24 : vector<256x1xf32> to vector<256x256xf32>
    %26 = arith.mulf %21, %25 : vector<256x256xf32>
    %27 = arith.truncf %26 : vector<256x256xf32> to vector<256x256xbf16>
    %28 = arith.truncf %13 : vector<8x256xf32> to vector<8x256xbf16>
    %cst_13 = arith.constant dense<0.000000e+00> : vector<8x256xf32>
    %29 = tpu.matmul %28, %27, %cst_13 {dimension_numbers = #tpu.dot_dimension_numbers<[1], [1], [0], [0], [0, 0, 1, 0], [], []>} : vector<8x256xbf16>, vector<256x256xbf16>, vector<8x256xf32> -> vector<8x256xf32>
    %30 = arith.addf %29, %10 : vector<8x256xf32>
    %c0_14 = arith.constant 0 : index
    %c0_15 = arith.constant 0 : index
    %c0_16 = arith.constant 0 : index
    %31 = vector.load %arg8[%c0_14, %c0_15, %c0_16] : memref<1x8x256xf32, #tpu.memory_space<vmem>>, vector<1x8x256xf32>
    %32 = vector.shape_cast %31 : vector<1x8x256xf32> to vector<8x256xf32>
    %33 = vector.shape_cast %30 : vector<8x256xf32> to vector<1x8x256xf32>
    tpu.vector_store %arg8[%c0_14, %c0_15, %c0_16], %33 {strides = array<i32>} : memref<1x8x256xf32, #tpu.memory_space<vmem>>, vector<1x8x256xf32>,
    %34 = arith.truncf %11 : vector<8x256xf32> to vector<8x256xbf16>
    %cst_17 = arith.constant dense<0.000000e+00> : vector<8x256xf32>
    %35 = tpu.matmul %34, %27, %cst_17 {dimension_numbers = #tpu.dot_dimension_numbers<[1], [0], [0], [1], [0, 0, 1, 1], [], []>} : vector<8x256xbf16>, vector<256x256xbf16>, vector<8x256xf32> -> vector<8x256xf32>
    %c0_i32_18 = arith.constant 0 : i32
    %36 = arith.cmpi eq, %arg1, %c0_i32_18 : i32
    %37 = arith.extui %36 : i1 to i32
    %c0_i32_19 = arith.constant 0 : i32
    %38 = arith.cmpi ne, %37, %c0_i32_19 : i32
    scf.if %38 {
      %c0_24 = arith.constant 0 : index
      %c0_25 = arith.constant 0 : index
      %45 = vector.load %arg11[%c0_24, %c0_25] : memref<8x256xf32, #tpu.memory_space<vmem>>, vector<8x256xf32>
      tpu.vector_store %arg11[%c0_24, %c0_25], %35 {strides = array<i32>} : memref<8x256xf32, #tpu.memory_space<vmem>>, vector<8x256xf32>,
    } else {
    }
    %c0_i32_20 = arith.constant 0 : i32
    %39 = arith.cmpi sgt, %arg1, %c0_i32_20 : i32
    %40 = arith.extui %39 : i1 to i32
    %c0_i32_21 = arith.constant 0 : i32
    %41 = arith.cmpi ne, %40, %c0_i32_21 : i32
    scf.if %41 {
      %c0_24 = arith.constant 0 : index
      %c0_25 = arith.constant 0 : index
      %45 = vector.load %arg11[%c0_24, %c0_25] : memref<8x256xf32, #tpu.memory_space<vmem>>, vector<8x256xf32>
      %46 = arith.addf %45, %35 : vector<8x256xf32>
      %c0_26 = arith.constant 0 : index
      %c0_27 = arith.constant 0 : index
      %47 = vector.load %arg11[%c0_26, %c0_27] : memref<8x256xf32, #tpu.memory_space<vmem>>, vector<8x256xf32>
      tpu.vector_store %arg11[%c0_26, %c0_27], %46 {strides = array<i32>} : memref<8x256xf32, #tpu.memory_space<vmem>>, vector<8x256xf32>,
    } else {
    }
    %c0_i32_22 = arith.constant 0 : i32
    %42 = arith.cmpi eq, %arg1, %c0_i32_22 : i32
    %43 = arith.extui %42 : i1 to i32
    %c0_i32_23 = arith.constant 0 : i32
    %44 = arith.cmpi ne, %43, %c0_i32_23 : i32
    scf.if %44 {
      %c0_24 = arith.constant 0 : index
      %c0_25 = arith.constant 0 : index
      %45 = vector.load %arg11[%c0_24, %c0_25] : memref<8x256xf32, #tpu.memory_space<vmem>>, vector<8x256xf32>
      %46 = arith.addf %45, %12 : vector<8x256xf32>
      %c0_26 = arith.constant 0 : index
      %c0_27 = arith.constant 0 : index
      %c0_28 = arith.constant 0 : index
      %47 = vector.load %arg9[%c0_26, %c0_27, %c0_28] : memref<1x8x256xf32, #tpu.memory_space<vmem>>, vector<1x8x256xf32>
      %48 = vector.shape_cast %47 : vector<1x8x256xf32> to vector<8x256xf32>
      %49 = vector.shape_cast %46 : vector<8x256xf32> to vector<1x8x256xf32>
      tpu.vector_store %arg9[%c0_26, %c0_27, %c0_28], %49 {strides = array<i32>} : memref<1x8x256xf32, #tpu.memory_space<vmem>>, vector<1x8x256xf32>,
    } else {
    }
    return
  }
  func.func @transform_0(%arg0: i32, %arg1: i32) -> (i32, i32, i32) {
    %c0_i32 = arith.constant 0 : i32
    %c0_i32_0 = arith.constant 0 : i32
    return %arg0, %c0_i32, %arg1 : i32, i32, i32
  }
  func.func @transform_1(%arg0: i32, %arg1: i32) -> (i32, i32, i32) {
    %c0_i32 = arith.constant 0 : i32
    %c0_i32_0 = arith.constant 0 : i32
    %c0_i32_1 = arith.constant 0 : i32
    return %arg0, %c0_i32, %c0_i32_0 : i32, i32, i32
  }
  func.func @transform_2(%arg0: i32, %arg1: i32) -> (i32, i32) {
    %c0_i32 = arith.constant 0 : i32
    %c0_i32_0 = arith.constant 0 : i32
    %c0_i32_1 = arith.constant 0 : i32
    return %c0_i32, %c0_i32_0 : i32, i32
  }
  func.func @transform_3(%arg0: i32, %arg1: i32) -> (i32, i32) {
    %c0_i32 = arith.constant 0 : i32
    %c0_i32_0 = arith.constant 0 : i32
    %c0_i32_1 = arith.constant 0 : i32
    return %c0_i32, %c0_i32_0 : i32, i32
  }
  func.func @transform_4(%arg0: i32, %arg1: i32) -> (i32, i32) {
    %c0_i32 = arith.constant 0 : i32
    %c0_i32_0 = arith.constant 0 : i32
    %c0_i32_1 = arith.constant 0 : i32
    return %c0_i32, %c0_i32_0 : i32, i32
  }
  func.func @transform_5(%arg0: i32, %arg1: i32) -> (i32, i32) {
    %c0_i32 = arith.constant 0 : i32
    %c0_i32_0 = arith.constant 0 : i32
    %c0_i32_1 = arith.constant 0 : i32
    return %c0_i32, %c0_i32_0 : i32, i32
  }
  func.func @transform_6(%arg0: i32, %arg1: i32) -> (i32, i32, i32) {
    %c0_i32 = arith.constant 0 : i32
    %c0_i32_0 = arith.constant 0 : i32
    return %arg0, %c0_i32, %arg1 : i32, i32, i32
  }
  func.func @transform_7(%arg0: i32, %arg1: i32) -> (i32, i32, i32) {
    %c0_i32 = arith.constant 0 : i32
    %c0_i32_0 = arith.constant 0 : i32
    %c0_i32_1 = arith.constant 0 : i32
    return %arg0, %c0_i32, %c0_i32_0 : i32, i32, i32
  }
}

</mosaic_0001>

<llo_original>
// kernel: tpu_custom_call.1
$region0: #{tpu_custom_call.1}
  #allocation0 [shape = 'u32[]', space=smem, size = 0x4, offset = 0x4, fixed_abs, tag = 'smem constant byte address 0x4 - core index']
  #allocation1 [shape = 'u32[144,128]{1,0:T(1,128)}', space=vmem, size = 0x12000, scoped, tag = 'internal scratch']
  #allocation2 [shape = 'f32[16,256]{1,0:T(8,128)}', space=vmem, size = 0x4000, scoped, tag = 'scratch operand']
  #allocation3 [shape = 'f32[8,256]{1,0:T(8,128)}', space=vmem, size = 0x2000, scoped, tag = 'scratch operand']
  %s0 = inlined_call_operand.vmem [shape: f32[2,4,256], index: 0, kind: input, shape index: {}]
  %s1 = inlined_call_operand.vmem [shape: f32[2,4,256], index: 1, kind: input, shape index: {}]
  %s2 = inlined_call_operand.vmem [shape: f32[16,4], index: 2, kind: input, shape index: {}]
  %s3 = inlined_call_operand.vmem [shape: f32[16,1], index: 3, kind: input, shape index: {}]
  %s4 = inlined_call_operand.vmem [shape: f32[16,4], index: 4, kind: input, shape index: {}]
  %s5 = inlined_call_operand.vmem [shape: f32[16,1], index: 5, kind: input, shape index: {}]
  %s6 = inlined_call_operand.hbm [shape: f32[2,8,256], index: 6, kind: output, shape index: {0}]
  %s7 = inlined_call_operand.hbm [shape: f32[2,8,256], index: 7, kind: output, shape index: {1}]
  %8 = xla_tuple %s6, %s7
  %s9 = sld [smem:[#allocation0]]
  $region81: #{tpu_custom_call.1} parent=0
    _
  %s11 = ssub.s32 1, %s9
  %s12 = scalar_select 0, %s11, %s9
  $region1: #{tpu_custom_call.1} parent=0
    #allocation4 [shape = 'u8[16384]{0}', space=vmem, size = 0x4000, scoped, tag = 'output window, operand 0']
    #allocation5 [shape = 's32[2]{0}', space=sflag, size = 0x8, scoped, tag = 'scoped memory for tpu_custom_call.1']
    #allocation6 [shape = 'u8[16384]{0}', space=vmem, size = 0x4000, scoped, tag = 'output window, operand 1']
    #allocation7 [shape = 's32[2]{0}', space=sflag, size = 0x8, scoped, tag = 'scoped memory for tpu_custom_call.1']
    %13 = vsyncpa [#allocation5], 0
    %s14 = scalar_lea.sflag [#allocation5], 1
    %15 = vsyncpa %s14, 0
    %16 = vsyncpa [#allocation7], 0
    %s17 = scalar_lea.sflag [#allocation7], 1
    %18 = vsyncpa %s17, 0
    loop: start=0, step=1, limit=4
    $region2: #{tpu_custom_call.1} parent=1 // loop_pre_header
      _
    $region3: #{tpu_custom_call.1} parent=1 // loop_header
      %s20 = sphi 0, %s24
      %p21 = scmp.ge.s32.totalorder %s20, 4
      %s27 = sphi 0, %s39
      %s28 = sphi 0, %s35
      %s29 = sphi 0, %s27
      %s30 = sphi 0, %s28
      %s31 = sphi 0, %s29
      %s32 = sphi 0, %s30
      %s44 = sphi 0, %s46
      %s47 = sphi 0, %s44
      %s48 = sphi 0, %s47
      %s64 = sphi 0, %s48
      %s70 = sphi 0, %s72
      %s73 = sphi 0, %s70
      %s74 = sphi 0, %s73
      %s90 = sphi 0, %s74
      %s94 = sphi 0, %s94
      %s96 = sphi 0, %s94
      %s97 = sphi 0, %s96
      %s111 = sphi 0, %s97
      %s115 = sphi 0, %s115
      %s117 = sphi 0, %s115
      %s118 = sphi 0, %s117
      %s132 = sphi 0, %s118
      %s136 = sphi 0, %s136
      %s138 = sphi 0, %s136
      %s139 = sphi 0, %s138
      %s153 = sphi 0, %s139
      %s157 = sphi 0, %s157
      %s159 = sphi 0, %s157
      %s160 = sphi 0, %s159
      %s174 = sphi 0, %s160
      %s182 = sphi 0, %s184
      %s185 = sphi 0, %s182
      %s186 = sphi 0, %s185
      %s202 = sphi 0, %s186
      %s208 = sphi 0, %s210
      %s211 = sphi 0, %s208
      %s212 = sphi 0, %s211
      %s228 = sphi 0, %s212
    $region4: #{tpu_custom_call.1} parent=1 // loop_header_branch
      %23 = sbr.rel (%p21) target = $region8
    $region5: #{tpu_custom_call.1} parent=1 // loop_body
      %s25 = ssub.s32 %s20, 1
      %s26 = ssub.s32 %s20, 2
      %s33 = sadd.s32 1, %s28
      %p34 = scmp.ge.s32.totalorder %s33, 1
      %s35 = scalar_select %p34, 0, %s33
      %s36 = sadd.s32 1, %s27
      %s37 = scalar_select %p34, %s36, %s27
      %p38 = scmp.ge.s32.totalorder %s37, 2
      %s39 = scalar_select %p38, 0, %s37
      %s40 = ssub.s32 %s27, %s39
      %s41 = ssub.s32 %s28, %s35
      %s42 = sor.u32 %s40, %s41
      %p43 = scmp.eq.s32.totalorder %s42, 0
      %s45 = sadd.s32 %s44, 1
      %s46 = scalar_select %p43, %s44, %s45
      %p49 = pneg %p43
      %p50 = scmp.eq.s32.totalorder %s20, 1
      %p51 = por %p49, %p50
      %p52 = scmp.ne.s32.totalorder %s44, %s47
      %p53 = scmp.eq.s32.totalorder %s20, 0
      %p54 = por %p52, %p53
      %p55 = scmp.ne.s32.totalorder %s44, %s47
      %p56 = scmp.eq.s32.totalorder %s25, 1
      %p57 = por %p55, %p56
      %p58 = scmp.ne.s32.totalorder %s47, %s48
      %p59 = scmp.eq.s32.totalorder %s25, 0
      %p60 = por %p58, %p59
      %p61 = scmp.ne.s32.totalorder %s47, %s48
      %p62 = scmp.eq.s32.totalorder %s26, 1
      %p63 = por %p61, %p62
      %p65 = scmp.ne.s32.totalorder %s48, %s64
      %p66 = scmp.eq.s32.totalorder %s26, 0
      %p67 = por %p65, %p66
      %s68 = ssub.s32 %s27, %s39
      %p69 = scmp.eq.s32.totalorder %s68, 0
      %s71 = sadd.s32 %s70, 1
      %s72 = scalar_select %p69, %s70, %s71
      %p75 = pneg %p69
      %p76 = scmp.eq.s32.totalorder %s20, 1
      %p77 = por %p75, %p76
      %p78 = scmp.ne.s32.totalorder %s70, %s73
      %p79 = scmp.eq.s32.totalorder %s20, 0
      %p80 = por %p78, %p79
      %p81 = scmp.ne.s32.totalorder %s70, %s73
      %p82 = scmp.eq.s32.totalorder %s25, 1
      %p83 = por %p81, %p82
      %p84 = scmp.ne.s32.totalorder %s73, %s74
      %p85 = scmp.eq.s32.totalorder %s25, 0
      %p86 = por %p84, %p85
      %p87 = scmp.ne.s32.totalorder %s73, %s74
      %p88 = scmp.eq.s32.totalorder %s26, 1
      %p89 = por %p87, %p88
      %p91 = scmp.ne.s32.totalorder %s74, %s90
      %p92 = scmp.eq.s32.totalorder %s26, 0
      %p93 = por %p91, %p92
      %s95 = sadd.s32 %s94, 1
      %p98 = scmp.eq.s32.totalorder %s20, 1
      %p99 = scmp.ne.s32.totalorder %s94, %s96
      %p100 = scmp.eq.s32.totalorder %s20, 0
      %p101 = por %p99, %p100
      %p102 = scmp.ne.s32.totalorder %s94, %s96
      %p103 = scmp.eq.s32.totalorder %s25, 1
      %p104 = por %p102, %p103
      %p105 = scmp.ne.s32.totalorder %s96, %s97
      %p106 = scmp.eq.s32.totalorder %s25, 0
      %p107 = por %p105, %p106
      %p108 = scmp.ne.s32.totalorder %s96, %s97
      %p109 = scmp.eq.s32.totalorder %s26, 1
      %p110 = por %p108, %p109
      %p112 = scmp.ne.s32.totalorder %s97, %s111
      %p113 = scmp.eq.s32.totalorder %s26, 0
      %p114 = por %p112, %p113
      %s116 = sadd.s32 %s115, 1
      %p119 = scmp.eq.s32.totalorder %s20, 1
      %p120 = scmp.ne.s32.totalorder %s115, %s117
      %p121 = scmp.eq.s32.totalorder %s20, 0
      %p122 = por %p120, %p121
      %p123 = scmp.ne.s32.totalorder %s115, %s117
      %p124 = scmp.eq.s32.totalorder %s25, 1
      %p125 = por %p123, %p124
      %p126 = scmp.ne.s32.totalorder %s117, %s118
      %p127 = scmp.eq.s32.totalorder %s25, 0
      %p128 = por %p126, %p127
      %p129 = scmp.ne.s32.totalorder %s117, %s118
      %p130 = scmp.eq.s32.totalorder %s26, 1
      %p131 = por %p129, %p130
      %p133 = scmp.ne.s32.totalorder %s118, %s132
      %p134 = scmp.eq.s32.totalorder %s26, 0
      %p135 = por %p133, %p134
      %s137 = sadd.s32 %s136, 1
      %p140 = scmp.eq.s32.totalorder %s20, 1
      %p141 = scmp.ne.s32.totalorder %s136, %s138
      %p142 = scmp.eq.s32.totalorder %s20, 0
      %p143 = por %p141, %p142
      %p144 = scmp.ne.s32.totalorder %s136, %s138
      %p145 = scmp.eq.s32.totalorder %s25, 1
      %p146 = por %p144, %p145
      %p147 = scmp.ne.s32.totalorder %s138, %s139
      %p148 = scmp.eq.s32.totalorder %s25, 0
      %p149 = por %p147, %p148
      %p150 = scmp.ne.s32.totalorder %s138, %s139
      %p151 = scmp.eq.s32.totalorder %s26, 1
      %p152 = por %p150, %p151
      %p154 = scmp.ne.s32.totalorder %s139, %s153
      %p155 = scmp.eq.s32.totalorder %s26, 0
      %p156 = por %p154, %p155
      %s158 = sadd.s32 %s157, 1
      %p161 = scmp.eq.s32.totalorder %s20, 1
      %p162 = scmp.ne.s32.totalorder %s157, %s159
      %p163 = scmp.eq.s32.totalorder %s20, 0
      %p164 = por %p162, %p163
      %p165 = scmp.ne.s32.totalorder %s157, %s159
      %p166 = scmp.eq.s32.totalorder %s25, 1
      %p167 = por %p165, %p166
      %p168 = scmp.ne.s32.totalorder %s159, %s160
      %p169 = scmp.eq.s32.totalorder %s25, 0
      %p170 = por %p168, %p169
      %p171 = scmp.ne.s32.totalorder %s159, %s160
      %p172 = scmp.eq.s32.totalorder %s26, 1
      %p173 = por %p171, %p172
      %p175 = scmp.ne.s32.totalorder %s160, %s174
      %p176 = scmp.eq.s32.totalorder %s26, 0
      %p177 = por %p175, %p176
      %s178 = ssub.s32 %s27, %s39
      %s179 = ssub.s32 %s28, %s35
      %s180 = sor.u32 %s178, %s179
      %p181 = scmp.eq.s32.totalorder %s180, 0
      %s183 = sadd.s32 %s182, 1
      %s184 = scalar_select %p181, %s182, %s183
      %p187 = pneg %p181
      %p188 = scmp.eq.s32.totalorder %s20, 1
      %p189 = por %p187, %p188
      %p190 = scmp.ne.s32.totalorder %s182, %s185
      %p191 = scmp.eq.s32.totalorder %s20, 0
      %p192 = por %p190, %p191
      %p193 = scmp.ne.s32.totalorder %s182, %s185
      %p194 = scmp.eq.s32.totalorder %s25, 1
      %p195 = por %p193, %p194
      %p196 = scmp.ne.s32.totalorder %s185, %s186
      %p197 = scmp.eq.s32.totalorder %s25, 0
      %p198 = por %p196, %p197
      %p199 = scmp.ne.s32.totalorder %s185, %s186
      %p200 = scmp.eq.s32.totalorder %s26, 1
      %p201 = por %p199, %p200
      %p203 = scmp.ne.s32.totalorder %s186, %s202
      %p204 = scmp.eq.s32.totalorder %s26, 0
      %p205 = por %p203, %p204
      %s206 = ssub.s32 %s27, %s39
      %p207 = scmp.eq.s32.totalorder %s206, 0
      %s209 = sadd.s32 %s208, 1
      %s210 = scalar_select %p207, %s208, %s209
      %p213 = pneg %p207
      %p214 = scmp.eq.s32.totalorder %s20, 1
      %p215 = por %p213, %p214
      %p216 = scmp.ne.s32.totalorder %s208, %s211
      %p217 = scmp.eq.s32.totalorder %s20, 0
      %p218 = por %p216, %p217
      %p219 = scmp.ne.s32.totalorder %s208, %s211
      %p220 = scmp.eq.s32.totalorder %s25, 1
      %p221 = por %p219, %p220
      %p222 = scmp.ne.s32.totalorder %s211, %s212
      %p223 = scmp.eq.s32.totalorder %s25, 0
      %p224 = por %p222, %p223
      %p225 = scmp.ne.s32.totalorder %s211, %s212
      %p226 = scmp.eq.s32.totalorder %s26, 1
      %p227 = por %p225, %p226
      %p229 = scmp.ne.s32.totalorder %s212, %s228
      %p230 = scmp.eq.s32.totalorder %s26, 0
      %p231 = por %p229, %p230
      %p232 = scmp.le.s32.totalorder 1, %s20
      %p233 = scmp.lt.s32.totalorder %s20, 3
      %p234 = pnand %p232, %p233
      %p235 = pneg %p234
      // Predicated region
      $region9: #{tpu_custom_call.1} parent=5 // pred_check
        _
      $region10: #{tpu_custom_call.1} parent=5 // pred_check_branch
        %237 = sbr.rel (%p234) target = $region12
      $region11: #{tpu_custom_call.1} parent=5 // pred_region
        %s238 = ssub.s32 %s20, 1
        // Predicated region
        $region13: #{tpu_custom_call.1} parent=11 // pred_check
          %p239 = pneg %p107
        $region14: #{tpu_custom_call.1} parent=11 // pred_check_branch
          %241 = sbr.rel (%p239) target = $region16
        $region15: #{tpu_custom_call.1} parent=11 // pred_region
          _
        $region16: #{tpu_custom_call.1} parent=11 // pred_fallthru
          _
        // Predicated region
        $region17: #{tpu_custom_call.1} parent=11 // pred_check
          %p242 = pneg %p128
        $region18: #{tpu_custom_call.1} parent=11 // pred_check_branch
          %244 = sbr.rel (%p242) target = $region20
        $region19: #{tpu_custom_call.1} parent=11 // pred_region
          _
        $region20: #{tpu_custom_call.1} parent=11 // pred_fallthru
          _
        // Predicated region
        $region21: #{tpu_custom_call.1} parent=11 // pred_check
          %p245 = pneg %p149
        $region22: #{tpu_custom_call.1} parent=11 // pred_check_branch
          %247 = sbr.rel (%p245) target = $region24
        $region23: #{tpu_custom_call.1} parent=11 // pred_region
          _
        $region24: #{tpu_custom_call.1} parent=11 // pred_fallthru
          _
        // Predicated region
        $region25: #{tpu_custom_call.1} parent=11 // pred_check
          %p248 = pneg %p170
        $region26: #{tpu_custom_call.1} parent=11 // pred_check_branch
          %250 = sbr.rel (%p248) target = $region28
        $region27: #{tpu_custom_call.1} parent=11 // pred_region
          _
        $region28: #{tpu_custom_call.1} parent=11 // pred_fallthru
          _
      $region12: #{tpu_custom_call.1} parent=5 // pred_fallthru
        _
      %p251 = scmp.lt.s32.totalorder %s20, 2
      // Predicated region
      $region29: #{tpu_custom_call.1} parent=5 // pred_check
        %p252 = pneg %p251
      $region30: #{tpu_custom_call.1} parent=5 // pred_check_branch
        %254 = sbr.rel (%p252) target = $region32
      $region31: #{tpu_custom_call.1} parent=5 // pred_region
        // Predicated region
        $region33: #{tpu_custom_call.1} parent=31 // pred_check
          %p255 = pneg %p54
        $region34: #{tpu_custom_call.1} parent=31 // pred_check_branch
          %257 = sbr.rel (%p255) target = $region36
        $region35: #{tpu_custom_call.1} parent=31 // pred_region
          %s258 = smul.u32 2, %s28
          %p259 = scmp.lt.s32.totalorder %s27, 1
          %s260 = scalar_select %p259, %s27, 1
          %p261 = scmp.lt.s32.totalorder %s258, 1
          %s262 = scalar_select %p261, %s258, 1
          %s263 = smul.addr %s260, 2
          %s264 = sadd.s32 %s262, %s263
          %s265 = smul.addr %s264, 4
          %s266 = scalar_lea.vmem %s0, %s265
          %s267 = smul.u32 2, %s28
        $region36: #{tpu_custom_call.1} parent=31 // pred_fallthru
          _
        // Predicated region
        $region37: #{tpu_custom_call.1} parent=31 // pred_check
          %p268 = pneg %p80
        $region38: #{tpu_custom_call.1} parent=31 // pred_check_branch
          %270 = sbr.rel (%p268) target = $region40
        $region39: #{tpu_custom_call.1} parent=31 // pred_region
          %p271 = scmp.lt.s32.totalorder %s27, 1
          %s272 = scalar_select %p271, %s27, 1
          %s273 = smul.addr %s272, 2
          %s274 = smul.addr %s273, 4
          %s275 = scalar_lea.vmem %s1, %s274
        $region40: #{tpu_custom_call.1} parent=31 // pred_fallthru
          _
      $region32: #{tpu_custom_call.1} parent=5 // pred_fallthru
        _
      %p276 = scmp.le.s32.totalorder 1, %s20
      %p277 = scmp.lt.s32.totalorder %s20, 3
      %p278 = pnand %p276, %p277
      %p279 = pneg %p278
      // Predicated region
      $region41: #{tpu_custom_call.1} parent=5 // pred_check
        _
      $region42: #{tpu_custom_call.1} parent=5 // pred_check_branch
        %281 = sbr.rel (%p278) target = $region44
      $region43: #{tpu_custom_call.1} parent=5 // pred_region
        %s282 = ssub.s32 %s20, 1
        %s283 = smul.u32 2, %s30
        %p284 = scmp.lt.s32.totalorder %s29, 1
        %s285 = scalar_select %p284, %s29, 1
        %p286 = scmp.lt.s32.totalorder %s283, 1
        %s287 = scalar_select %p286, %s283, 1
        %s288 = smul.addr %s285, 2
        %s289 = sadd.s32 %s287, %s288
        %s290 = smul.addr %s289, 4
        %s291 = scalar_lea.vmem %s0, %s290
        %p292 = pneg %p60
        %p293 = pneg %p57
        %p294 = scmp.lt.s32.totalorder %s29, 1
        %s295 = scalar_select %p294, %s29, 1
        %s296 = smul.addr %s295, 2
        %s297 = smul.addr %s296, 4
        %s298 = scalar_lea.vmem %s1, %s297
        %p299 = pneg %p86
        %p300 = pneg %p83
        %p301 = pneg %p107
        %p302 = pneg %p104
        %p303 = pneg %p128
        %p304 = pneg %p125
        %p305 = pneg %p149
        %p306 = pneg %p146
        %p307 = pneg %p170
        %p308 = pneg %p167
        %p309 = pneg %p198
        %p310 = pneg %p195
        %s311 = sand.u32 %s185, 1
        %s312 = scalar_lea.sflag [#allocation5], %s311
        %s313 = sand.u32 %s185, 1
        %s314 = smul.addr %s313, 16
        %s315 = scalar_lea.vmem [#allocation4], %s314
        %p316 = pneg %p224
        %p317 = pneg %p221
        %s318 = sand.u32 %s211, 1
        %s319 = scalar_lea.sflag [#allocation7], %s318
        %s320 = sand.u32 %s211, 1
        %s321 = smul.addr %s320, 16
        %s322 = scalar_lea.vmem [#allocation6], %s321
        %s323 = smul.u32 2, %s30
        %p324 = scmp.lt.s32.totalorder %s29, 1
        %s325 = scalar_select %p324, %s29, 1
        %p326 = scmp.lt.s32.totalorder %s323, 1
        %s327 = scalar_select %p326, %s323, 1
        %s328 = smul.addr %s325, 2
        %s329 = sadd.s32 %s327, %s328
        %s330 = smul.addr %s329, 4
        %s331 = scalar_lea.vmem %s0, %s330
        %s332 = smul.u32 2, %s30
        %p333 = scmp.lt.s32.totalorder %s29, 1
        %s334 = scalar_select %p333, %s29, 1
        %s335 = smul.addr %s334, 2
        %s336 = smul.addr %s335, 4
        %s337 = scalar_lea.vmem %s1, %s336
        %s338 = smul.u32 2, %s30
        %p340 = scmp.eq.s32.totalorder %s30, 0
        // Predicated region
        $region45: #{tpu_custom_call.1} parent=43 // pred_check
          %p341 = pneg %p340
        $region46: #{tpu_custom_call.1} parent=43 // pred_check_branch
          %343 = sbr.rel (%p341) target = $region48
        $region47: #{tpu_custom_call.1} parent=43 // pred_region
          %v344 = vld [vmem:[%s4] sm:$0xff]
          %v345 = vld [vmem:[%s4 + $0x8] sm:$0xff]
          %v346 = vld [vmem:[%s337] sm:$0xff]
          %v347 = vld [vmem:[%s5] sm:$0xff]
          %v348 = vld [vmem:[%s5 + $0x8] sm:$0xff]
          %350 = vset.pattern.permute.xlu0 0
          %351 = vperm.xlu0 %350, %v347
          %v352 = vpop.permute.xlu0 %351
          %355 = vset.pattern.permute.xlu0 0
          %356 = vperm.xlu0 %355, %v348
          %v357 = vpop.permute.xlu0 %356
          %v360 = vcombine.high %v346, %v346
          %vm361 = vcmask 31744
          %v363 = vsel %vm361, %v344, 0
          %v366 = vsel %vm361, %v345, 0
          %vm368 = vcmask 1043456
          %v369 = vsel %vm368, %v346, 0
          %v371 = vsel %vm368, %v360, 0
          %373 = vmatprep.subr.mxu0 %v371
          %374 = vmatpush1.msra.mxu0 %v369
          %375 = vmatprep.subr.mxu0 0.0
          %376 = vmatpush1.msra.mxu0 0.0
          %377 = vmatprep.subr.mxu0 0.0
          %378 = vmatpush1.msra.mxu0 0.0
          %379 = vmatprep.subr.mxu0 0.0
          %380 = vmatpush1.msra.mxu0 0.0
          %381 = vmatprep.subr.mxu0 0.0
          %382 = vmatpush1.msra.mxu0 0.0
          %383 = vmatprep.subr.mxu0 0.0
          %384 = vmatpush1.msra.mxu0 0.0
          %385 = vmatprep.subr.mxu0 0.0
          %386 = vmatpush1.msra.mxu0 0.0
          %387 = vmatprep.subr.mxu0 0.0
          %388 = vmatpush1.msra.mxu0 0.0
          %389 = vmatprep.subr.mxu0 0.0
          %390 = vmatpush1.msra.mxu0 0.0
          %391 = vmatprep.subr.mxu0 0.0
          %392 = vmatpush1.msra.mxu0 0.0
          %393 = vmatprep.subr.mxu0 0.0
          %394 = vmatpush1.msra.mxu0 0.0
          %395 = vmatprep.subr.mxu0 0.0
          %396 = vmatpush1.msra.mxu0 0.0
          %397 = vmatprep.subr.mxu0 0.0
          %398 = vmatpush1.msra.mxu0 0.0
          %399 = vmatprep.subr.mxu0 0.0
          %400 = vmatpush1.msra.mxu0 0.0
          %401 = vmatprep.subr.mxu0 0.0
          %402 = vmatpush1.msra.mxu0 0.0
          %403 = vmatprep.subr.mxu0 0.0
          %404 = vmatpush1.msra.mxu0 0.0
          %405 = vmatprep.subr.mxu0 0.0
          %406 = vmatpush1.msra.mxu0 0.0
          %407 = vmatprep.subr.mxu0 0.0
          %408 = vmatpush1.msra.mxu0 0.0
          %409 = vmatprep.subr.mxu0 0.0
          %410 = vmatpush1.msra.mxu0 0.0
          %411 = vmatprep.subr.mxu0 0.0
          %412 = vmatpush1.msra.mxu0 0.0
          %413 = vmatprep.subr.mxu0 0.0
          %414 = vmatpush1.msra.mxu0 0.0
          %415 = vmatprep.subr.mxu0 0.0
          %416 = vmatpush1.msra.mxu0 0.0
          %417 = vmatprep.subr.mxu0 0.0
          %418 = vmatpush1.msra.mxu0 0.0
          %419 = vmatprep.subr.mxu0 0.0
          %420 = vmatpush1.msra.mxu0 0.0
          %421 = vmatprep.subr.mxu0 0.0
          %422 = vmatpush1.msra.mxu0 0.0
          %423 = vmatprep.subr.mxu0 0.0
          %424 = vmatpush1.msra.mxu0 0.0
          %425 = vmatprep.subr.mxu0 0.0
          %426 = vmatpush1.msra.mxu0 0.0
          %427 = vmatprep.subr.mxu0 0.0
          %428 = vmatpush1.msra.mxu0 0.0
          %429 = vmatprep.subr.mxu0 0.0
          %430 = vmatpush1.msra.mxu0 0.0
          %431 = vmatprep.subr.mxu0 0.0
          %432 = vmatpush1.msra.mxu0 0.0
          %433 = vmatprep.subr.mxu0 0.0
          %434 = vmatpush1.msra.mxu0 0.0
          %435 = vmatprep.subr.mxu0 0.0
          %436 = vmatpush1.msra.mxu0 0.0
          %437 = vmatprep.mubr.f32.mxu0 0.0
          %438 = vmatmul.mubr.f32.gmra.mrb[0].mxu0 %v363
          %v439 = vpop.f32.mrb[0].mxu0
          %v440 = vadd.f32 %v352, %v439
          %v441 = vpop.f32.mrb[0].mxu0
          %v442 = vadd.f32 %v352, %v441
          %443 = vmatprep.mubr.f32.mxu0 0.0
          %444 = vmatmul.mubr.f32.gmra.mrb[0].mxu0 %v366
          %v445 = vpop.f32.mrb[0].mxu0
          %v446 = vadd.f32 %v357, %v445
          %v447 = vpop.f32.mrb[0].mxu0
          %v448 = vadd.f32 %v357, %v447
          %449 = vdwg.mxu0
          %450 = vst [vmem:[#allocation2] sm:$0xff] %v440
          %451 = vst [vmem:[#allocation2 + $0x8] sm:$0xff] %v442
          %452 = vst [vmem:[#allocation2 + $0x10] sm:$0xff] %v446
          %453 = vst [vmem:[#allocation2 + $0x18] sm:$0xff] %v448
        $region48: #{tpu_custom_call.1} parent=43 // pred_fallthru
          _
        %v454 = vld [vmem:[%s2] sm:$0xff]
        %v455 = vld [vmem:[%s2 + $0x8] sm:$0xff]
        %v456 = vld [vmem:[%s331] sm:$0xff]
        %v457 = vld [vmem:[%s3] sm:$0xff]
        %v458 = vld [vmem:[%s3 + $0x8] sm:$0xff]
        %460 = vset.pattern.permute.xlu0 0
        %461 = vperm.xlu0 %460, %v457
        %v462 = vpop.permute.xlu0 %461
        %465 = vset.pattern.permute.xlu0 0
        %466 = vperm.xlu0 %465, %v458
        %v467 = vpop.permute.xlu0 %466
        %v470 = vcombine.high %v456, %v456
        %vm471 = vcmask 31744
        %v473 = vsel %vm471, %v454, 0
        %v476 = vsel %vm471, %v455, 0
        %vm478 = vcmask 1043456
        %v479 = vsel %vm478, %v456, 0
        %v481 = vsel %vm478, %v470, 0
        %483 = vmatprep.subr.mxu0 %v481
        %484 = vmatpush1.msra.mxu0 %v479
        %485 = vmatprep.subr.mxu0 0.0
        %486 = vmatpush1.msra.mxu0 0.0
        %487 = vmatprep.subr.mxu0 0.0
        %488 = vmatpush1.msra.mxu0 0.0
        %489 = vmatprep.subr.mxu0 0.0
        %490 = vmatpush1.msra.mxu0 0.0
        %491 = vmatprep.subr.mxu0 0.0
        %492 = vmatpush1.msra.mxu0 0.0
        %493 = vmatprep.subr.mxu0 0.0
        %494 = vmatpush1.msra.mxu0 0.0
        %495 = vmatprep.subr.mxu0 0.0
        %496 = vmatpush1.msra.mxu0 0.0
        %497 = vmatprep.subr.mxu0 0.0
        %498 = vmatpush1.msra.mxu0 0.0
        %499 = vmatprep.subr.mxu0 0.0
        %500 = vmatpush1.msra.mxu0 0.0
        %501 = vmatprep.subr.mxu0 0.0
        %502 = vmatpush1.msra.mxu0 0.0
        %503 = vmatprep.subr.mxu0 0.0
        %504 = vmatpush1.msra.mxu0 0.0
        %505 = vmatprep.subr.mxu0 0.0
        %506 = vmatpush1.msra.mxu0 0.0
        %507 = vmatprep.subr.mxu0 0.0
        %508 = vmatpush1.msra.mxu0 0.0
        %509 = vmatprep.subr.mxu0 0.0
        %510 = vmatpush1.msra.mxu0 0.0
        %511 = vmatprep.subr.mxu0 0.0
        %512 = vmatpush1.msra.mxu0 0.0
        %513 = vmatprep.subr.mxu0 0.0
        %514 = vmatpush1.msra.mxu0 0.0
        %515 = vmatprep.subr.mxu0 0.0
        %516 = vmatpush1.msra.mxu0 0.0
        %517 = vmatprep.subr.mxu0 0.0
        %518 = vmatpush1.msra.mxu0 0.0
        %519 = vmatprep.subr.mxu0 0.0
        %520 = vmatpush1.msra.mxu0 0.0
        %521 = vmatprep.subr.mxu0 0.0
        %522 = vmatpush1.msra.mxu0 0.0
        %523 = vmatprep.subr.mxu0 0.0
        %524 = vmatpush1.msra.mxu0 0.0
        %525 = vmatprep.subr.mxu0 0.0
        %526 = vmatpush1.msra.mxu0 0.0
        %527 = vmatprep.subr.mxu0 0.0
        %528 = vmatpush1.msra.mxu0 0.0
        %529 = vmatprep.subr.mxu0 0.0
        %530 = vmatpush1.msra.mxu0 0.0
        %531 = vmatprep.subr.mxu0 0.0
        %532 = vmatpush1.msra.mxu0 0.0
        %533 = vmatprep.subr.mxu0 0.0
        %534 = vmatpush1.msra.mxu0 0.0
        %535 = vmatprep.subr.mxu0 0.0
        %536 = vmatpush1.msra.mxu0 0.0
        %537 = vmatprep.subr.mxu0 0.0
        %538 = vmatpush1.msra.mxu0 0.0
        %539 = vmatprep.subr.mxu0 0.0
        %540 = vmatpush1.msra.mxu0 0.0
        %541 = vmatprep.subr.mxu0 0.0
        %542 = vmatpush1.msra.mxu0 0.0
        %543 = vmatprep.subr.mxu0 0.0
        %544 = vmatpush1.msra.mxu0 0.0
        %545 = vmatprep.subr.mxu0 0.0
        %546 = vmatpush1.msra.mxu0 0.0
        %547 = vmatprep.mubr.f32.mxu0 0.0
        %548 = vmatmul.mubr.f32.gmra.mrb[0].mxu0 %v473
        %v549 = vpop.f32.mrb[0].mxu0
        %v550 = vadd.f32 %v462, %v549
        %v551 = vpop.f32.mrb[0].mxu0
        %v552 = vadd.f32 %v462, %v551
        %553 = vmatprep.mubr.f32.mxu0 0.0
        %554 = vmatmul.mubr.f32.gmra.mrb[0].mxu0 %v476
        %v555 = vpop.f32.mrb[0].mxu0
        %v556 = vadd.f32 %v467, %v555
        %v557 = vpop.f32.mrb[0].mxu0
        %v558 = vadd.f32 %v467, %v557
        %559 = vdwg.mxu0
        %v560 = vld [vmem:[#allocation2] sm:$0xff]
        %v561 = vld [vmem:[#allocation2 + $0x8] sm:$0xff]
        %v562 = vld [vmem:[#allocation2 + $0x10] sm:$0xff]
        %v563 = vld [vmem:[#allocation2 + $0x18] sm:$0xff]
        %v564 = vpack.c.bf16 %v550, %v550
        %v565 = vpack.c.bf16 %v552, %v552
        %v566 = vpack.c.bf16 %v560, %v560
        %v567 = vpack.c.bf16 %v561, %v561
        %568 = vxpose.xlu0.c.b16.start [1/8] %v564, 128
        %569 = vxpose.xlu0.c.b16.cont [2/8] 0, 128
        %570 = vxpose.xlu0.c.b16.cont [3/8] 0, 128
        %571 = vxpose.xlu0.c.b16.cont [4/8] 0, 128
        %572 = vxpose.xlu0.c.b16.cont [5/8] 0, 128
        %573 = vxpose.xlu0.c.b16.cont [6/8] 0, 128
        %574 = vxpose.xlu0.c.b16.cont [7/8] 0, 128
        %575 = vxpose.xlu0.c.b16.end [8/8] 0, 128
        %v576 = vpop.trf.xlu0
        %v577 = vpop.trf.xlu0
        %v578 = vpop.trf.xlu0
        %v579 = vpop.trf.xlu0
        %v580 = vpop.trf.xlu0
        %v581 = vpop.trf.xlu0
        %v582 = vpop.trf.xlu0
        %v583 = vpop.trf.xlu0
        %584 = vxpose.xlu0.c.b16.start [1/8] %v565, 128
        %585 = vxpose.xlu0.c.b16.cont [2/8] 0, 128
        %586 = vxpose.xlu0.c.b16.cont [3/8] 0, 128
        %587 = vxpose.xlu0.c.b16.cont [4/8] 0, 128
        %588 = vxpose.xlu0.c.b16.cont [5/8] 0, 128
        %589 = vxpose.xlu0.c.b16.cont [6/8] 0, 128
        %590 = vxpose.xlu0.c.b16.cont [7/8] 0, 128
        %591 = vxpose.xlu0.c.b16.end [8/8] 0, 128
        %v592 = vpop.trf.xlu0
        %v593 = vpop.trf.xlu0
        %v594 = vpop.trf.xlu0
        %v595 = vpop.trf.xlu0
        %v596 = vpop.trf.xlu0
        %v597 = vpop.trf.xlu0
        %v598 = vpop.trf.xlu0
        %v599 = vpop.trf.xlu0
        %vm600 = vcmask 64512
        %v602 = vsel %vm600, %v576, 0
        %v605 = vsel %vm600, %v577, 0
        %v608 = vsel %vm600, %v578, 0
        %v611 = vsel %vm600, %v579, 0
        %v614 = vsel %vm600, %v580, 0
        %v617 = vsel %vm600, %v581, 0
        %v620 = vsel %vm600, %v582, 0
        %v623 = vsel %vm600, %v583, 0
        %v626 = vsel %vm600, %v592, 0
        %v629 = vsel %vm600, %v593, 0
        %v632 = vsel %vm600, %v594, 0
        %v635 = vsel %vm600, %v595, 0
        %v638 = vsel %vm600, %v596, 0
        %v641 = vsel %vm600, %v597, 0
        %v644 = vsel %vm600, %v598, 0
        %v647 = vsel %vm600, %v599, 0
        %v650 = vsel %vm478, %v566, 0
        %v653 = vsel %vm478, %v567, 0
        %655 = vmatprep.subr.bf16.mxu0 %v653
        %656 = vmatpush1.bf16.msra.mxu0 %v650
        %657 = vmatprep.subr.bf16.mxu0 0
        %658 = vmatpush1.bf16.msra.mxu0 0
        %659 = vmatprep.subr.bf16.mxu0 0
        %660 = vmatpush1.bf16.msra.mxu0 0
        %661 = vmatprep.subr.bf16.mxu0 0
        %662 = vmatpush1.bf16.msra.mxu0 0
        %663 = vmatprep.subr.bf16.mxu0 0
        %664 = vmatpush1.bf16.msra.mxu0 0
        %665 = vmatprep.subr.bf16.mxu0 0
        %666 = vmatpush1.bf16.msra.mxu0 0
        %667 = vmatprep.subr.bf16.mxu0 0
        %668 = vmatpush1.bf16.msra.mxu0 0
        %669 = vmatprep.subr.bf16.mxu0 0
        %670 = vmatpush1.bf16.msra.mxu0 0
        %671 = vmatprep.subr.bf16.mxu0 0
        %672 = vmatpush1.bf16.msra.mxu0 0
        %673 = vmatprep.subr.bf16.mxu0 0
        %674 = vmatpush1.bf16.msra.mxu0 0
        %675 = vmatprep.subr.bf16.mxu0 0
        %676 = vmatpush1.bf16.msra.mxu0 0
        %677 = vmatprep.subr.bf16.mxu0 0
        %678 = vmatpush1.bf16.msra.mxu0 0
        %679 = vmatprep.subr.bf16.mxu0 0
        %680 = vmatpush1.bf16.msra.mxu0 0
        %681 = vmatprep.subr.bf16.mxu0 0
        %682 = vmatpush1.bf16.msra.mxu0 0
        %683 = vmatprep.subr.bf16.mxu0 0
        %684 = vmatpush1.bf16.msra.mxu0 0
        %685 = vmatprep.subr.bf16.mxu0 0
        %686 = vmatpush1.bf16.msra.mxu0 0
        %687 = vmatprep.mubr.bf16.mxu0 0
        %688 = vmatmul.mubr.bf16.gmra.mrb[0].mxu0 %v602
        %v689 = vpop.f32.mrb[0].mxu0
        %v690 = vadd.f32 0.0, %v689
        %v691 = vpop.f32.mrb[0].mxu0
        %v692 = vadd.f32 0.0, %v691
        %v693 = vpop.f32.mrb[0].mxu0
        %v694 = vadd.f32 0.0, %v693
        %v695 = vpop.f32.mrb[0].mxu0
        %v696 = vadd.f32 0.0, %v695
        %697 = vmatprep.mubr.bf16.mxu0 0
        %698 = vmatmul.mubr.bf16.gmra.mrb[0].mxu0 %v605
        %v699 = vpop.f32.mrb[0].mxu0
        %v700 = vadd.f32 0.0, %v699
        %v701 = vpop.f32.mrb[0].mxu0
        %v702 = vadd.f32 0.0, %v701
        %v703 = vpop.f32.mrb[0].mxu0
        %v704 = vadd.f32 0.0, %v703
        %v705 = vpop.f32.mrb[0].mxu0
        %v706 = vadd.f32 0.0, %v705
        %707 = vmatprep.mubr.bf16.mxu0 0
        %708 = vmatmul.mubr.bf16.gmra.mrb[0].mxu0 %v608
        %v709 = vpop.f32.mrb[0].mxu0
        %v710 = vadd.f32 0.0, %v709
        %v711 = vpop.f32.mrb[0].mxu0
        %v712 = vadd.f32 0.0, %v711
        %v713 = vpop.f32.mrb[0].mxu0
        %v714 = vadd.f32 0.0, %v713
        %v715 = vpop.f32.mrb[0].mxu0
        %v716 = vadd.f32 0.0, %v715
        %717 = vmatprep.mubr.bf16.mxu0 0
        %718 = vmatmul.mubr.bf16.gmra.mrb[0].mxu0 %v611
        %v719 = vpop.f32.mrb[0].mxu0
        %v720 = vadd.f32 0.0, %v719
        %v721 = vpop.f32.mrb[0].mxu0
        %v722 = vadd.f32 0.0, %v721
        %v723 = vpop.f32.mrb[0].mxu0
        %v724 = vadd.f32 0.0, %v723
        %v725 = vpop.f32.mrb[0].mxu0
        %v726 = vadd.f32 0.0, %v725
        %727 = vmatprep.mubr.bf16.mxu0 0
        %728 = vmatmul.mubr.bf16.gmra.mrb[0].mxu0 %v614
        %v729 = vpop.f32.mrb[0].mxu0
        %v730 = vadd.f32 0.0, %v729
        %v731 = vpop.f32.mrb[0].mxu0
        %v732 = vadd.f32 0.0, %v731
        %v733 = vpop.f32.mrb[0].mxu0
        %v734 = vadd.f32 0.0, %v733
        %v735 = vpop.f32.mrb[0].mxu0
        %v736 = vadd.f32 0.0, %v735
        %737 = vmatprep.mubr.bf16.mxu0 0
        %738 = vmatmul.mubr.bf16.gmra.mrb[0].mxu0 %v617
        %v739 = vpop.f32.mrb[0].mxu0
        %v740 = vadd.f32 0.0, %v739
        %v741 = vpop.f32.mrb[0].mxu0
        %v742 = vadd.f32 0.0, %v741
        %v743 = vpop.f32.mrb[0].mxu0
        %v744 = vadd.f32 0.0, %v743
        %v745 = vpop.f32.mrb[0].mxu0
        %v746 = vadd.f32 0.0, %v745
        %747 = vmatprep.mubr.bf16.mxu0 0
        %748 = vmatmul.mubr.bf16.gmra.mrb[0].mxu0 %v620
        %v749 = vpop.f32.mrb[0].mxu0
        %v750 = vadd.f32 0.0, %v749
        %v751 = vpop.f32.mrb[0].mxu0
        %v752 = vadd.f32 0.0, %v751
        %v753 = vpop.f32.mrb[0].mxu0
        %v754 = vadd.f32 0.0, %v753
        %v755 = vpop.f32.mrb[0].mxu0
        %v756 = vadd.f32 0.0, %v755
        %757 = vmatprep.mubr.bf16.mxu0 0
        %758 = vmatmul.mubr.bf16.gmra.mrb[0].mxu0 %v623
        %v759 = vpop.f32.mrb[0].mxu0
        %v760 = vadd.f32 0.0, %v759
        %v761 = vpop.f32.mrb[0].mxu0
        %v762 = vadd.f32 0.0, %v761
        %v763 = vpop.f32.mrb[0].mxu0
        %v764 = vadd.f32 0.0, %v763
        %v765 = vpop.f32.mrb[0].mxu0
        %v766 = vadd.f32 0.0, %v765
        %767 = vmatprep.mubr.bf16.mxu0 0
        %768 = vmatmul.mubr.bf16.gmra.mrb[0].mxu0 %v626
        %v769 = vpop.f32.mrb[0].mxu0
        %v770 = vadd.f32 0.0, %v769
        %v771 = vpop.f32.mrb[0].mxu0
        %v772 = vadd.f32 0.0, %v771
        %v773 = vpop.f32.mrb[0].mxu0
        %v774 = vadd.f32 0.0, %v773
        %v775 = vpop.f32.mrb[0].mxu0
        %v776 = vadd.f32 0.0, %v775
        %777 = vmatprep.mubr.bf16.mxu0 0
        %778 = vmatmul.mubr.bf16.gmra.mrb[0].mxu0 %v629
        %v779 = vpop.f32.mrb[0].mxu0
        %v780 = vadd.f32 0.0, %v779
        %v781 = vpop.f32.mrb[0].mxu0
        %v782 = vadd.f32 0.0, %v781
        %v783 = vpop.f32.mrb[0].mxu0
        %v784 = vadd.f32 0.0, %v783
        %v785 = vpop.f32.mrb[0].mxu0
        %v786 = vadd.f32 0.0, %v785
        %787 = vmatprep.mubr.bf16.mxu0 0
        %788 = vmatmul.mubr.bf16.gmra.mrb[0].mxu0 %v632
        %v789 = vpop.f32.mrb[0].mxu0
        %v790 = vadd.f32 0.0, %v789
        %v791 = vpop.f32.mrb[0].mxu0
        %v792 = vadd.f32 0.0, %v791
        %v793 = vpop.f32.mrb[0].mxu0
        %v794 = vadd.f32 0.0, %v793
        %v795 = vpop.f32.mrb[0].mxu0
        %v796 = vadd.f32 0.0, %v795
        %797 = vmatprep.mubr.bf16.mxu0 0
        %798 = vmatmul.mubr.bf16.gmra.mrb[0].mxu0 %v635
        %v799 = vpop.f32.mrb[0].mxu0
        %v800 = vadd.f32 0.0, %v799
        %v801 = vpop.f32.mrb[0].mxu0
        %v802 = vadd.f32 0.0, %v801
        %v803 = vpop.f32.mrb[0].mxu0
        %v804 = vadd.f32 0.0, %v803
        %v805 = vpop.f32.mrb[0].mxu0
        %v806 = vadd.f32 0.0, %v805
        %807 = vmatprep.mubr.bf16.mxu0 0
        %808 = vmatmul.mubr.bf16.gmra.mrb[0].mxu0 %v638
        %v809 = vpop.f32.mrb[0].mxu0
        %v810 = vadd.f32 0.0, %v809
        %v811 = vpop.f32.mrb[0].mxu0
        %v812 = vadd.f32 0.0, %v811
        %v813 = vpop.f32.mrb[0].mxu0
        %v814 = vadd.f32 0.0, %v813
        %v815 = vpop.f32.mrb[0].mxu0
        %v816 = vadd.f32 0.0, %v815
        %817 = vmatprep.mubr.bf16.mxu0 0
        %818 = vmatmul.mubr.bf16.gmra.mrb[0].mxu0 %v641
        %v819 = vpop.f32.mrb[0].mxu0
        %v820 = vadd.f32 0.0, %v819
        %v821 = vpop.f32.mrb[0].mxu0
        %v822 = vadd.f32 0.0, %v821
        %v823 = vpop.f32.mrb[0].mxu0
        %v824 = vadd.f32 0.0, %v823
        %v825 = vpop.f32.mrb[0].mxu0
        %v826 = vadd.f32 0.0, %v825
        %827 = vmatprep.mubr.bf16.mxu0 0
        %828 = vmatmul.mubr.bf16.gmra.mrb[0].mxu0 %v644
        %v829 = vpop.f32.mrb[0].mxu0
        %v830 = vadd.f32 0.0, %v829
        %v831 = vpop.f32.mrb[0].mxu0
        %v832 = vadd.f32 0.0, %v831
        %v833 = vpop.f32.mrb[0].mxu0
        %v834 = vadd.f32 0.0, %v833
        %v835 = vpop.f32.mrb[0].mxu0
        %v836 = vadd.f32 0.0, %v835
        %837 = vmatprep.mubr.bf16.mxu0 0
        %838 = vmatmul.mubr.bf16.gmra.mrb[0].mxu0 %v647
        %v839 = vpop.f32.mrb[0].mxu0
        %v840 = vadd.f32 0.0, %v839
        %v841 = vpop.f32.mrb[0].mxu0
        %v842 = vadd.f32 0.0, %v841
        %v843 = vpop.f32.mrb[0].mxu0
        %v844 = vadd.f32 0.0, %v843
        %v845 = vpop.f32.mrb[0].mxu0
        %v846 = vadd.f32 0.0, %v845
        %847 = vdwg.mxu0
        %v848 = vmax.f32 %v690, %v692
        %849 = vmax.xlane.f32.xlu0 %v848
        %v850 = vpop.xlane.xlu0 %849
        %v851 = vmax.f32 %v694, %v696
        %852 = vmax.xlane.f32.xlu0 %v851
        %v853 = vpop.xlane.xlu0 %852
        %v854 = vmax.f32 %v700, %v702
        %855 = vmax.xlane.f32.xlu0 %v854
        %v856 = vpop.xlane.xlu0 %855
        %v857 = vmax.f32 %v704, %v706
        %858 = vmax.xlane.f32.xlu0 %v857
        %v859 = vpop.xlane.xlu0 %858
        %v860 = vmax.f32 %v710, %v712
        %861 = vmax.xlane.f32.xlu0 %v860
        %v862 = vpop.xlane.xlu0 %861
        %v863 = vmax.f32 %v714, %v716
        %864 = vmax.xlane.f32.xlu0 %v863
        %v865 = vpop.xlane.xlu0 %864
        %v866 = vmax.f32 %v720, %v722
        %867 = vmax.xlane.f32.xlu0 %v866
        %v868 = vpop.xlane.xlu0 %867
        %v869 = vmax.f32 %v724, %v726
        %870 = vmax.xlane.f32.xlu0 %v869
        %v871 = vpop.xlane.xlu0 %870
        %v872 = vmax.f32 %v730, %v732
        %873 = vmax.xlane.f32.xlu0 %v872
        %v874 = vpop.xlane.xlu0 %873
        %v875 = vmax.f32 %v734, %v736
        %876 = vmax.xlane.f32.xlu0 %v875
        %v877 = vpop.xlane.xlu0 %876
        %v878 = vmax.f32 %v740, %v742
        %879 = vmax.xlane.f32.xlu0 %v878
        %v880 = vpop.xlane.xlu0 %879
        %v881 = vmax.f32 %v744, %v746
        %882 = vmax.xlane.f32.xlu0 %v881
        %v883 = vpop.xlane.xlu0 %882
        %v884 = vmax.f32 %v750, %v752
        %885 = vmax.xlane.f32.xlu0 %v884
        %v886 = vpop.xlane.xlu0 %885
        %v887 = vmax.f32 %v754, %v756
        %888 = vmax.xlane.f32.xlu0 %v887
        %v889 = vpop.xlane.xlu0 %888
        %v890 = vmax.f32 %v760, %v762
        %891 = vmax.xlane.f32.xlu0 %v890
        %v892 = vpop.xlane.xlu0 %891
        %v893 = vmax.f32 %v764, %v766
        %894 = vmax.xlane.f32.xlu0 %v893
        %v895 = vpop.xlane.xlu0 %894
        %v896 = vmax.f32 %v770, %v772
        %897 = vmax.xlane.f32.xlu0 %v896
        %v898 = vpop.xlane.xlu0 %897
        %v899 = vmax.f32 %v774, %v776
        %900 = vmax.xlane.f32.xlu0 %v899
        %v901 = vpop.xlane.xlu0 %900
        %v902 = vmax.f32 %v780, %v782
        %903 = vmax.xlane.f32.xlu0 %v902
        %v904 = vpop.xlane.xlu0 %903
        %v905 = vmax.f32 %v784, %v786
        %906 = vmax.xlane.f32.xlu0 %v905
        %v907 = vpop.xlane.xlu0 %906
        %v908 = vmax.f32 %v790, %v792
        %909 = vmax.xlane.f32.xlu0 %v908
        %v910 = vpop.xlane.xlu0 %909
        %v911 = vmax.f32 %v794, %v796
        %912 = vmax.xlane.f32.xlu0 %v911
        %v913 = vpop.xlane.xlu0 %912
        %v914 = vmax.f32 %v800, %v802
        %915 = vmax.xlane.f32.xlu0 %v914
        %v916 = vpop.xlane.xlu0 %915
        %v917 = vmax.f32 %v804, %v806
        %918 = vmax.xlane.f32.xlu0 %v917
        %v919 = vpop.xlane.xlu0 %918
        %v920 = vmax.f32 %v810, %v812
        %921 = vmax.xlane.f32.xlu0 %v920
        %v922 = vpop.xlane.xlu0 %921
        %v923 = vmax.f32 %v814, %v816
        %924 = vmax.xlane.f32.xlu0 %v923
        %v925 = vpop.xlane.xlu0 %924
        %v926 = vmax.f32 %v820, %v822
        %927 = vmax.xlane.f32.xlu0 %v926
        %v928 = vpop.xlane.xlu0 %927
        %v929 = vmax.f32 %v824, %v826
        %930 = vmax.xlane.f32.xlu0 %v929
        %v931 = vpop.xlane.xlu0 %930
        %v932 = vmax.f32 %v830, %v832
        %933 = vmax.xlane.f32.xlu0 %v932
        %v934 = vpop.xlane.xlu0 %933
        %v935 = vmax.f32 %v834, %v836
        %936 = vmax.xlane.f32.xlu0 %v935
        %v937 = vpop.xlane.xlu0 %936
        %v938 = vmax.f32 %v840, %v842
        %939 = vmax.xlane.f32.xlu0 %v938
        %v940 = vpop.xlane.xlu0 %939
        %v941 = vmax.f32 %v844, %v846
        %942 = vmax.xlane.f32.xlu0 %v941
        %v943 = vpop.xlane.xlu0 %942
        %v944 = vsub.f32 %v690, %v850
        %v945 = vsub.f32 %v692, %v850
        %v946 = vsub.f32 %v694, %v853
        %v947 = vsub.f32 %v696, %v853
        %v948 = vsub.f32 %v700, %v856
        %v949 = vsub.f32 %v702, %v856
        %v950 = vsub.f32 %v704, %v859
        %v951 = vsub.f32 %v706, %v859
        %v952 = vsub.f32 %v710, %v862
        %v953 = vsub.f32 %v712, %v862
        %v954 = vsub.f32 %v714, %v865
        %v955 = vsub.f32 %v716, %v865
        %v956 = vsub.f32 %v720, %v868
        %v957 = vsub.f32 %v722, %v868
        %v958 = vsub.f32 %v724, %v871
        %v959 = vsub.f32 %v726, %v871
        %v960 = vsub.f32 %v730, %v874
        %v961 = vsub.f32 %v732, %v874
        %v962 = vsub.f32 %v734, %v877
        %v963 = vsub.f32 %v736, %v877
        %v964 = vsub.f32 %v740, %v880
        %v965 = vsub.f32 %v742, %v880
        %v966 = vsub.f32 %v744, %v883
        %v967 = vsub.f32 %v746, %v883
        %v968 = vsub.f32 %v750, %v886
        %v969 = vsub.f32 %v752, %v886
        %v970 = vsub.f32 %v754, %v889
        %v971 = vsub.f32 %v756, %v889
        %v972 = vsub.f32 %v760, %v892
        %v973 = vsub.f32 %v762, %v892
        %v974 = vsub.f32 %v764, %v895
        %v975 = vsub.f32 %v766, %v895
        %v976 = vsub.f32 %v770, %v898
        %v977 = vsub.f32 %v772, %v898
        %v978 = vsub.f32 %v774, %v901
        %v979 = vsub.f32 %v776, %v901
        %v980 = vsub.f32 %v780, %v904
        %v981 = vsub.f32 %v782, %v904
        %v982 = vsub.f32 %v784, %v907
        %v983 = vsub.f32 %v786, %v907
        %v984 = vsub.f32 %v790, %v910
        %v985 = vsub.f32 %v792, %v910
        %v986 = vsub.f32 %v794, %v913
        %v987 = vsub.f32 %v796, %v913
        %v988 = vsub.f32 %v800, %v916
        %v989 = vsub.f32 %v802, %v916
        %v990 = vsub.f32 %v804, %v919
        %v991 = vsub.f32 %v806, %v919
        %v992 = vsub.f32 %v810, %v922
        %v993 = vsub.f32 %v812, %v922
        %v994 = vsub.f32 %v814, %v925
        %v995 = vsub.f32 %v816, %v925
        %v996 = vsub.f32 %v820, %v928
        %v997 = vsub.f32 %v822, %v928
        %v998 = vsub.f32 %v824, %v931
        %v999 = vsub.f32 %v826, %v931
        %v1000 = vsub.f32 %v830, %v934
        %v1001 = vsub.f32 %v832, %v934
        %v1002 = vsub.f32 %v834, %v937
        %v1003 = vsub.f32 %v836, %v937
        %v1004 = vsub.f32 %v840, %v940
        %v1005 = vsub.f32 %v842, %v940
        %v1006 = vsub.f32 %v844, %v943
        %v1007 = vsub.f32 %v846, %v943
        %v1008 = vmul.f32 %v944, 1.442695
        %v1009 = vpow.pop %v1008
        %v1010 = vmul.f32 %v945, 1.442695
        %v1011 = vpow.pop %v1010
        %v1012 = vmul.f32 %v946, 1.442695
        %v1013 = vpow.pop %v1012
        %v1014 = vmul.f32 %v947, 1.442695
        %v1015 = vpow.pop %v1014
        %v1016 = vmul.f32 %v948, 1.442695
        %v1017 = vpow.pop %v1016
        %v1018 = vmul.f32 %v949, 1.442695
        %v1019 = vpow.pop %v1018
        %v1020 = vmul.f32 %v950, 1.442695
        %v1021 = vpow.pop %v1020
        %v1022 = vmul.f32 %v951, 1.442695
        %v1023 = vpow.pop %v1022
        %v1024 = vmul.f32 %v952, 1.442695
        %v1025 = vpow.pop %v1024
        %v1026 = vmul.f32 %v953, 1.442695
        %v1027 = vpow.pop %v1026
        %v1028 = vmul.f32 %v954, 1.442695
        %v1029 = vpow.pop %v1028
        %v1030 = vmul.f32 %v955, 1.442695
        %v1031 = vpow.pop %v1030
        %v1032 = vmul.f32 %v956, 1.442695
        %v1033 = vpow.pop %v1032
        %v1034 = vmul.f32 %v957, 1.442695
        %v1035 = vpow.pop %v1034
        %v1036 = vmul.f32 %v958, 1.442695
        %v1037 = vpow.pop %v1036
        %v1038 = vmul.f32 %v959, 1.442695
        %v1039 = vpow.pop %v1038
        %v1040 = vmul.f32 %v960, 1.442695
        %v1041 = vpow.pop %v1040
        %v1042 = vmul.f32 %v961, 1.442695
        %v1043 = vpow.pop %v1042
        %v1044 = vmul.f32 %v962, 1.442695
        %v1045 = vpow.pop %v1044
        %v1046 = vmul.f32 %v963, 1.442695
        %v1047 = vpow.pop %v1046
        %v1048 = vmul.f32 %v964, 1.442695
        %v1049 = vpow.pop %v1048
        %v1050 = vmul.f32 %v965, 1.442695
        %v1051 = vpow.pop %v1050
        %v1052 = vmul.f32 %v966, 1.442695
        %v1053 = vpow.pop %v1052
        %v1054 = vmul.f32 %v967, 1.442695
        %v1055 = vpow.pop %v1054
        %v1056 = vmul.f32 %v968, 1.442695
        %v1057 = vpow.pop %v1056
        %v1058 = vmul.f32 %v969, 1.442695
        %v1059 = vpow.pop %v1058
        %v1060 = vmul.f32 %v970, 1.442695
        %v1061 = vpow.pop %v1060
        %v1062 = vmul.f32 %v971, 1.442695
        %v1063 = vpow.pop %v1062
        %v1064 = vmul.f32 %v972, 1.442695
        %v1065 = vpow.pop %v1064
        %v1066 = vmul.f32 %v973, 1.442695
        %v1067 = vpow.pop %v1066
        %v1068 = vmul.f32 %v974, 1.442695
        %v1069 = vpow.pop %v1068
        %v1070 = vmul.f32 %v975, 1.442695
        %v1071 = vpow.pop %v1070
        %v1072 = vmul.f32 %v976, 1.442695
        %v1073 = vpow.pop %v1072
        %v1074 = vmul.f32 %v977, 1.442695
        %v1075 = vpow.pop %v1074
        %v1076 = vmul.f32 %v978, 1.442695
        %v1077 = vpow.pop %v1076
        %v1078 = vmul.f32 %v979, 1.442695
        %v1079 = vpow.pop %v1078
        %v1080 = vmul.f32 %v980, 1.442695
        %v1081 = vpow.pop %v1080
        %v1082 = vmul.f32 %v981, 1.442695
        %v1083 = vpow.pop %v1082
        %v1084 = vmul.f32 %v982, 1.442695
        %v1085 = vpow.pop %v1084
        %v1086 = vmul.f32 %v983, 1.442695
        %v1087 = vpow.pop %v1086
        %v1088 = vmul.f32 %v984, 1.442695
        %v1089 = vpow.pop %v1088
        %v1090 = vmul.f32 %v985, 1.442695
        %v1091 = vpow.pop %v1090
        %v1092 = vmul.f32 %v986, 1.442695
        %v1093 = vpow.pop %v1092
        %v1094 = vmul.f32 %v987, 1.442695
        %v1095 = vpow.pop %v1094
        %v1096 = vmul.f32 %v988, 1.442695
        %v1097 = vpow.pop %v1096
        %v1098 = vmul.f32 %v989, 1.442695
        %v1099 = vpow.pop %v1098
        %v1100 = vmul.f32 %v990, 1.442695
        %v1101 = vpow.pop %v1100
        %v1102 = vmul.f32 %v991, 1.442695
        %v1103 = vpow.pop %v1102
        %v1104 = vmul.f32 %v992, 1.442695
        %v1105 = vpow.pop %v1104
        %v1106 = vmul.f32 %v993, 1.442695
        %v1107 = vpow.pop %v1106
        %v1108 = vmul.f32 %v994, 1.442695
        %v1109 = vpow.pop %v1108
        %v1110 = vmul.f32 %v995, 1.442695
        %v1111 = vpow.pop %v1110
        %v1112 = vmul.f32 %v996, 1.442695
        %v1113 = vpow.pop %v1112
        %v1114 = vmul.f32 %v997, 1.442695
        %v1115 = vpow.pop %v1114
        %v1116 = vmul.f32 %v998, 1.442695
        %v1117 = vpow.pop %v1116
        %v1118 = vmul.f32 %v999, 1.442695
        %v1119 = vpow.pop %v1118
        %v1120 = vmul.f32 %v1000, 1.442695
        %v1121 = vpow.pop %v1120
        %v1122 = vmul.f32 %v1001, 1.442695
        %v1123 = vpow.pop %v1122
        %v1124 = vmul.f32 %v1002, 1.442695
        %v1125 = vpow.pop %v1124
        %v1126 = vmul.f32 %v1003, 1.442695
        %v1127 = vpow.pop %v1126
        %v1128 = vmul.f32 %v1004, 1.442695
        %v1129 = vpow.pop %v1128
        %v1130 = vmul.f32 %v1005, 1.442695
        %v1131 = vpow.pop %v1130
        %v1132 = vmul.f32 %v1006, 1.442695
        %v1133 = vpow.pop %v1132
        %v1134 = vmul.f32 %v1007, 1.442695
        %v1135 = vpow.pop %v1134
        %v1136 = vadd.f32 %v1009, %v1011
        %1137 = vadd.xlane.f32.xlu0 %v1136
        %v1138 = vpop.xlane.xlu0 %1137
        %v1139 = vadd.f32 %v1013, %v1015
        %1140 = vadd.xlane.f32.xlu0 %v1139
        %v1141 = vpop.xlane.xlu0 %1140
        %v1142 = vadd.f32 %v1017, %v1019
        %1143 = vadd.xlane.f32.xlu0 %v1142
        %v1144 = vpop.xlane.xlu0 %1143
        %v1145 = vadd.f32 %v1021, %v1023
        %1146 = vadd.xlane.f32.xlu0 %v1145
        %v1147 = vpop.xlane.xlu0 %1146
        %v1148 = vadd.f32 %v1025, %v1027
        %1149 = vadd.xlane.f32.xlu0 %v1148
        %v1150 = vpop.xlane.xlu0 %1149
        %v1151 = vadd.f32 %v1029, %v1031
        %1152 = vadd.xlane.f32.xlu0 %v1151
        %v1153 = vpop.xlane.xlu0 %1152
        %v1154 = vadd.f32 %v1033, %v1035
        %1155 = vadd.xlane.f32.xlu0 %v1154
        %v1156 = vpop.xlane.xlu0 %1155
        %v1157 = vadd.f32 %v1037, %v1039
        %1158 = vadd.xlane.f32.xlu0 %v1157
        %v1159 = vpop.xlane.xlu0 %1158
        %v1160 = vadd.f32 %v1041, %v1043
        %1161 = vadd.xlane.f32.xlu0 %v1160
        %v1162 = vpop.xlane.xlu0 %1161
        %v1163 = vadd.f32 %v1045, %v1047
        %1164 = vadd.xlane.f32.xlu0 %v1163
        %v1165 = vpop.xlane.xlu0 %1164
        %v1166 = vadd.f32 %v1049, %v1051
        %1167 = vadd.xlane.f32.xlu0 %v1166
        %v1168 = vpop.xlane.xlu0 %1167
        %v1169 = vadd.f32 %v1053, %v1055
        %1170 = vadd.xlane.f32.xlu0 %v1169
        %v1171 = vpop.xlane.xlu0 %1170
        %v1172 = vadd.f32 %v1057, %v1059
        %1173 = vadd.xlane.f32.xlu0 %v1172
        %v1174 = vpop.xlane.xlu0 %1173
        %v1175 = vadd.f32 %v1061, %v1063
        %1176 = vadd.xlane.f32.xlu0 %v1175
        %v1177 = vpop.xlane.xlu0 %1176
        %v1178 = vadd.f32 %v1065, %v1067
        %1179 = vadd.xlane.f32.xlu0 %v1178
        %v1180 = vpop.xlane.xlu0 %1179
        %v1181 = vadd.f32 %v1069, %v1071
        %1182 = vadd.xlane.f32.xlu0 %v1181
        %v1183 = vpop.xlane.xlu0 %1182
        %v1184 = vadd.f32 %v1073, %v1075
        %1185 = vadd.xlane.f32.xlu0 %v1184
        %v1186 = vpop.xlane.xlu0 %1185
        %v1187 = vadd.f32 %v1077, %v1079
        %1188 = vadd.xlane.f32.xlu0 %v1187
        %v1189 = vpop.xlane.xlu0 %1188
        %v1190 = vadd.f32 %v1081, %v1083
        %1191 = vadd.xlane.f32.xlu0 %v1190
        %v1192 = vpop.xlane.xlu0 %1191
        %v1193 = vadd.f32 %v1085, %v1087
        %1194 = vadd.xlane.f32.xlu0 %v1193
        %v1195 = vpop.xlane.xlu0 %1194
        %v1196 = vadd.f32 %v1089, %v1091
        %1197 = vadd.xlane.f32.xlu0 %v1196
        %v1198 = vpop.xlane.xlu0 %1197
        %v1199 = vadd.f32 %v1093, %v1095
        %1200 = vadd.xlane.f32.xlu0 %v1199
        %v1201 = vpop.xlane.xlu0 %1200
        %v1202 = vadd.f32 %v1097, %v1099
        %1203 = vadd.xlane.f32.xlu0 %v1202
        %v1204 = vpop.xlane.xlu0 %1203
        %v1205 = vadd.f32 %v1101, %v1103
        %1206 = vadd.xlane.f32.xlu0 %v1205
        %v1207 = vpop.xlane.xlu0 %1206
        %v1208 = vadd.f32 %v1105, %v1107
        %1209 = vadd.xlane.f32.xlu0 %v1208
        %v1210 = vpop.xlane.xlu0 %1209
        %v1211 = vadd.f32 %v1109, %v1111
        %1212 = vadd.xlane.f32.xlu0 %v1211
        %v1213 = vpop.xlane.xlu0 %1212
        %v1214 = vadd.f32 %v1113, %v1115
        %1215 = vadd.xlane.f32.xlu0 %v1214
        %v1216 = vpop.xlane.xlu0 %1215
        %v1217 = vadd.f32 %v1117, %v1119
        %1218 = vadd.xlane.f32.xlu0 %v1217
        %v1219 = vpop.xlane.xlu0 %1218
        %v1220 = vadd.f32 %v1121, %v1123
        %1221 = vadd.xlane.f32.xlu0 %v1220
        %v1222 = vpop.xlane.xlu0 %1221
        %v1223 = vadd.f32 %v1125, %v1127
        %1224 = vadd.xlane.f32.xlu0 %v1223
        %v1225 = vpop.xlane.xlu0 %1224
        %v1226 = vadd.f32 %v1129, %v1131
        %1227 = vadd.xlane.f32.xlu0 %v1226
        %v1228 = vpop.xlane.xlu0 %1227
        %v1229 = vadd.f32 %v1133, %v1135
        %1230 = vadd.xlane.f32.xlu0 %v1229
        %v1231 = vpop.xlane.xlu0 %1230
        %v1232 = vrcp.pop %v1138
        %v1233 = vrcp.pop %v1141
        %v1234 = vrcp.pop %v1144
        %v1235 = vrcp.pop %v1147
        %v1236 = vrcp.pop %v1150
        %v1237 = vrcp.pop %v1153
        %v1238 = vrcp.pop %v1156
        %v1239 = vrcp.pop %v1159
        %v1240 = vrcp.pop %v1162
        %v1241 = vrcp.pop %v1165
        %v1242 = vrcp.pop %v1168
        %v1243 = vrcp.pop %v1171
        %v1244 = vrcp.pop %v1174
        %v1245 = vrcp.pop %v1177
        %v1246 = vrcp.pop %v1180
        %v1247 = vrcp.pop %v1183
        %v1248 = vrcp.pop %v1186
        %v1249 = vrcp.pop %v1189
        %v1250 = vrcp.pop %v1192
        %v1251 = vrcp.pop %v1195
        %v1252 = vrcp.pop %v1198
        %v1253 = vrcp.pop %v1201
        %v1254 = vrcp.pop %v1204
        %v1255 = vrcp.pop %v1207
        %v1256 = vrcp.pop %v1210
        %v1257 = vrcp.pop %v1213
        %v1258 = vrcp.pop %v1216
        %v1259 = vrcp.pop %v1219
        %v1260 = vrcp.pop %v1222
        %v1261 = vrcp.pop %v1225
        %v1262 = vrcp.pop %v1228
        %v1263 = vrcp.pop %v1231
        %v1264 = vmul.f32 %v1009, %v1232
        %v1265 = vmul.f32 %v1011, %v1232
        %v1266 = vmul.f32 %v1013, %v1233
        %v1267 = vmul.f32 %v1015, %v1233
        %v1268 = vmul.f32 %v1017, %v1234
        %v1269 = vmul.f32 %v1019, %v1234
        %v1270 = vmul.f32 %v1021, %v1235
        %v1271 = vmul.f32 %v1023, %v1235
        %v1272 = vmul.f32 %v1025, %v1236
        %v1273 = vmul.f32 %v1027, %v1236
        %v1274 = vmul.f32 %v1029, %v1237
        %v1275 = vmul.f32 %v1031, %v1237
        %v1276 = vmul.f32 %v1033, %v1238
        %v1277 = vmul.f32 %v1035, %v1238
        %v1278 = vmul.f32 %v1037, %v1239
        %v1279 = vmul.f32 %v1039, %v1239
        %v1280 = vmul.f32 %v1041, %v1240
        %v1281 = vmul.f32 %v1043, %v1240
        %v1282 = vmul.f32 %v1045, %v1241
        %v1283 = vmul.f32 %v1047, %v1241
        %v1284 = vmul.f32 %v1049, %v1242
        %v1285 = vmul.f32 %v1051, %v1242
        %v1286 = vmul.f32 %v1053, %v1243
        %v1287 = vmul.f32 %v1055, %v1243
        %v1288 = vmul.f32 %v1057, %v1244
        %v1289 = vmul.f32 %v1059, %v1244
        %v1290 = vmul.f32 %v1061, %v1245
        %v1291 = vmul.f32 %v1063, %v1245
        %v1292 = vmul.f32 %v1065, %v1246
        %v1293 = vmul.f32 %v1067, %v1246
        %v1294 = vmul.f32 %v1069, %v1247
        %v1295 = vmul.f32 %v1071, %v1247
        %v1296 = vmul.f32 %v1073, %v1248
        %v1297 = vmul.f32 %v1075, %v1248
        %v1298 = vmul.f32 %v1077, %v1249
        %v1299 = vmul.f32 %v1079, %v1249
        %v1300 = vmul.f32 %v1081, %v1250
        %v1301 = vmul.f32 %v1083, %v1250
        %v1302 = vmul.f32 %v1085, %v1251
        %v1303 = vmul.f32 %v1087, %v1251
        %v1304 = vmul.f32 %v1089, %v1252
        %v1305 = vmul.f32 %v1091, %v1252
        %v1306 = vmul.f32 %v1093, %v1253
        %v1307 = vmul.f32 %v1095, %v1253
        %v1308 = vmul.f32 %v1097, %v1254
        %v1309 = vmul.f32 %v1099, %v1254
        %v1310 = vmul.f32 %v1101, %v1255
        %v1311 = vmul.f32 %v1103, %v1255
        %v1312 = vmul.f32 %v1105, %v1256
        %v1313 = vmul.f32 %v1107, %v1256
        %v1314 = vmul.f32 %v1109, %v1257
        %v1315 = vmul.f32 %v1111, %v1257
        %v1316 = vmul.f32 %v1113, %v1258
        %v1317 = vmul.f32 %v1115, %v1258
        %v1318 = vmul.f32 %v1117, %v1259
        %v1319 = vmul.f32 %v1119, %v1259
        %v1320 = vmul.f32 %v1121, %v1260
        %v1321 = vmul.f32 %v1123, %v1260
        %v1322 = vmul.f32 %v1125, %v1261
        %v1323 = vmul.f32 %v1127, %v1261
        %v1324 = vmul.f32 %v1129, %v1262
        %v1325 = vmul.f32 %v1131, %v1262
        %v1326 = vmul.f32 %v1133, %v1263
        %v1327 = vmul.f32 %v1135, %v1263
        %v1328 = vpack.c.bf16 %v1266, %v1264
        %v1329 = vpack.c.bf16 %v1267, %v1265
        %v1330 = vpack.c.bf16 %v1270, %v1268
        %v1331 = vpack.c.bf16 %v1271, %v1269
        %v1332 = vpack.c.bf16 %v1274, %v1272
        %v1333 = vpack.c.bf16 %v1275, %v1273
        %v1334 = vpack.c.bf16 %v1278, %v1276
        %v1335 = vpack.c.bf16 %v1279, %v1277
        %v1336 = vpack.c.bf16 %v1282, %v1280
        %v1337 = vpack.c.bf16 %v1283, %v1281
        %v1338 = vpack.c.bf16 %v1286, %v1284
        %v1339 = vpack.c.bf16 %v1287, %v1285
        %v1340 = vpack.c.bf16 %v1290, %v1288
        %v1341 = vpack.c.bf16 %v1291, %v1289
        %v1342 = vpack.c.bf16 %v1294, %v1292
        %v1343 = vpack.c.bf16 %v1295, %v1293
        %v1344 = vpack.c.bf16 %v1298, %v1296
        %v1345 = vpack.c.bf16 %v1299, %v1297
        %v1346 = vpack.c.bf16 %v1302, %v1300
        %v1347 = vpack.c.bf16 %v1303, %v1301
        %v1348 = vpack.c.bf16 %v1306, %v1304
        %v1349 = vpack.c.bf16 %v1307, %v1305
        %v1350 = vpack.c.bf16 %v1310, %v1308
        %v1351 = vpack.c.bf16 %v1311, %v1309
        %v1352 = vpack.c.bf16 %v1314, %v1312
        %v1353 = vpack.c.bf16 %v1315, %v1313
        %v1354 = vpack.c.bf16 %v1318, %v1316
        %v1355 = vpack.c.bf16 %v1319, %v1317
        %v1356 = vpack.c.bf16 %v1322, %v1320
        %v1357 = vpack.c.bf16 %v1323, %v1321
        %v1358 = vpack.c.bf16 %v1326, %v1324
        %v1359 = vpack.c.bf16 %v1327, %v1325
        %v1360 = vpack.c.bf16 %v562, %v562
        %v1361 = vpack.c.bf16 %v563, %v563
        %1362 = vmatprep.subr.bf16.mxu0 %v1329
        %1363 = vmatpush1.bf16.xpose.msra.mxu0 %v1328
        %1364 = vmatprep.subr.bf16.mxu0 %v1331
        %1365 = vmatpush1.bf16.xpose.msra.mxu0 %v1330
        %1366 = vmatprep.subr.bf16.mxu0 %v1333
        %1367 = vmatpush1.bf16.xpose.msra.mxu0 %v1332
        %1368 = vmatprep.subr.bf16.mxu0 %v1335
        %1369 = vmatpush1.bf16.xpose.msra.mxu0 %v1334
        %1370 = vmatprep.subr.bf16.mxu0 %v1337
        %1371 = vmatpush1.bf16.xpose.msra.mxu0 %v1336
        %1372 = vmatprep.subr.bf16.mxu0 %v1339
        %1373 = vmatpush1.bf16.xpose.msra.mxu0 %v1338
        %1374 = vmatprep.subr.bf16.mxu0 %v1341
        %1375 = vmatpush1.bf16.xpose.msra.mxu0 %v1340
        %1376 = vmatprep.subr.bf16.mxu0 %v1343
        %1377 = vmatpush1.bf16.xpose.msra.mxu0 %v1342
        %1378 = vmatprep.subr.bf16.mxu0 %v1345
        %1379 = vmatpush1.bf16.xpose.msra.mxu0 %v1344
        %1380 = vmatprep.subr.bf16.mxu0 %v1347
        %1381 = vmatpush1.bf16.xpose.msra.mxu0 %v1346
        %1382 = vmatprep.subr.bf16.mxu0 %v1349
        %1383 = vmatpush1.bf16.xpose.msra.mxu0 %v1348
        %1384 = vmatprep.subr.bf16.mxu0 %v1351
        %1385 = vmatpush1.bf16.xpose.msra.mxu0 %v1350
        %1386 = vmatprep.subr.bf16.mxu0 %v1353
        %1387 = vmatpush1.bf16.xpose.msra.mxu0 %v1352
        %1388 = vmatprep.subr.bf16.mxu0 %v1355
        %1389 = vmatpush1.bf16.xpose.msra.mxu0 %v1354
        %1390 = vmatprep.subr.bf16.mxu0 %v1357
        %1391 = vmatpush1.bf16.xpose.msra.mxu0 %v1356
        %1392 = vmatprep.subr.bf16.mxu0 %v1359
        %1393 = vmatpush1.bf16.xpose.msra.mxu0 %v1358
        %1394 = vmatprep.mubr.bf16.mxu0 %v1361
        %1395 = vmatmul.mubr.bf16.gmra.mrb[0].mxu0 %v1360
        %v1396 = vpop.f32.mrb[0].mxu0
        %v1397 = vadd.f32 %v550, %v1396
        %v1398 = vpop.f32.mrb[0].mxu0
        %v1399 = vadd.f32 %v552, %v1398
        %v1400 = vpop.f32.mrb[0].mxu0
        %v1401 = vpop.f32.mrb[0].mxu0
        %1402 = vdwg.mxu0
        %1403 = vst [vmem:[%s315] sm:$0xff] %v1397
        %1404 = vst [vmem:[%s315 + $0x8] sm:$0xff] %v1399
        %v1405 = vpack.c.bf16 %v556, %v556
        %v1406 = vpack.c.bf16 %v558, %v558
        %1407 = vmatprep.subr.bf16.mxu0 %v1329
        %1408 = vmatpush1.bf16.msra.mxu0 %v1328
        %1409 = vmatprep.subr.bf16.mxu0 %v1331
        %1410 = vmatpush1.bf16.msra.mxu0 %v1330
        %1411 = vmatprep.subr.bf16.mxu0 %v1333
        %1412 = vmatpush1.bf16.msra.mxu0 %v1332
        %1413 = vmatprep.subr.bf16.mxu0 %v1335
        %1414 = vmatpush1.bf16.msra.mxu0 %v1334
        %1415 = vmatprep.subr.bf16.mxu0 %v1337
        %1416 = vmatpush1.bf16.msra.mxu0 %v1336
        %1417 = vmatprep.subr.bf16.mxu0 %v1339
        %1418 = vmatpush1.bf16.msra.mxu0 %v1338
        %1419 = vmatprep.subr.bf16.mxu0 %v1341
        %1420 = vmatpush1.bf16.msra.mxu0 %v1340
        %1421 = vmatprep.subr.bf16.mxu0 %v1343
        %1422 = vmatpush1.bf16.msra.mxu0 %v1342
        %1423 = vmatprep.subr.bf16.mxu0 %v1345
        %1424 = vmatpush1.bf16.msra.mxu0 %v1344
        %1425 = vmatprep.subr.bf16.mxu0 %v1347
        %1426 = vmatpush1.bf16.msra.mxu0 %v1346
        %1427 = vmatprep.subr.bf16.mxu0 %v1349
        %1428 = vmatpush1.bf16.msra.mxu0 %v1348
        %1429 = vmatprep.subr.bf16.mxu0 %v1351
        %1430 = vmatpush1.bf16.msra.mxu0 %v1350
        %1431 = vmatprep.subr.bf16.mxu0 %v1353
        %1432 = vmatpush1.bf16.msra.mxu0 %v1352
        %1433 = vmatprep.subr.bf16.mxu0 %v1355
        %1434 = vmatpush1.bf16.msra.mxu0 %v1354
        %1435 = vmatprep.subr.bf16.mxu0 %v1357
        %1436 = vmatpush1.bf16.msra.mxu0 %v1356
        %1437 = vmatprep.subr.bf16.mxu0 %v1359
        %1438 = vmatpush1.bf16.msra.mxu0 %v1358
        %1439 = vmatprep.mubr.bf16.mxu0 %v1406
        %1440 = vmatmul.mubr.bf16.gmra.mrb[0].mxu0 %v1405
        %v1441 = vpop.f32.mrb[0].mxu0
        %v1442 = vadd.f32 0.0, %v1441
        %v1443 = vpop.f32.mrb[0].mxu0
        %v1444 = vadd.f32 0.0, %v1443
        %v1445 = vpop.f32.mrb[0].mxu0
        %v1446 = vpop.f32.mrb[0].mxu0
        %1447 = vdwg.mxu0
        // Predicated region
        $region49: #{tpu_custom_call.1} parent=43 // pred_check
          %p1448 = pneg %p340
        $region50: #{tpu_custom_call.1} parent=43 // pred_check_branch
          %1450 = sbr.rel (%p1448) target = $region52
        $region51: #{tpu_custom_call.1} parent=43 // pred_region
          %1451 = vst [vmem:[#allocation3] sm:$0xff] %v1442
          %1452 = vst [vmem:[#allocation3 + $0x8] sm:$0xff] %v1444
        $region52: #{tpu_custom_call.1} parent=43 // pred_fallthru
          _
        %p1453 = scmp.gt.s32.totalorder %s30, 0
        // Predicated region
        $region53: #{tpu_custom_call.1} parent=43 // pred_check
          %p1454 = pneg %p1453
        $region54: #{tpu_custom_call.1} parent=43 // pred_check_branch
          %1456 = sbr.rel (%p1454) target = $region56
        $region55: #{tpu_custom_call.1} parent=43 // pred_region
          %v1457 = vld [vmem:[#allocation3] sm:$0xff]
          %v1458 = vld [vmem:[#allocation3 + $0x8] sm:$0xff]
          %v1459 = vadd.f32 %v1457, %v1442
          %v1460 = vadd.f32 %v1458, %v1444
          %1461 = vst [vmem:[#allocation3] sm:$0xff] %v1459
          %1462 = vst [vmem:[#allocation3 + $0x8] sm:$0xff] %v1460
        $region56: #{tpu_custom_call.1} parent=43 // pred_fallthru
          _
        // Predicated region
        $region57: #{tpu_custom_call.1} parent=43 // pred_check
          %p1463 = pneg %p340
        $region58: #{tpu_custom_call.1} parent=43 // pred_check_branch
          %1465 = sbr.rel (%p1463) target = $region60
        $region59: #{tpu_custom_call.1} parent=43 // pred_region
          %v1466 = vld [vmem:[#allocation3] sm:$0xff]
          %v1467 = vld [vmem:[#allocation3 + $0x8] sm:$0xff]
          %v1468 = vadd.f32 %v1466, %v560
          %v1469 = vadd.f32 %v1467, %v561
          %1470 = vst [vmem:[%s322] sm:$0xff] %v1468
          %1471 = vst [vmem:[%s322 + $0x8] sm:$0xff] %v1469
        $region60: #{tpu_custom_call.1} parent=43 // pred_fallthru
          _
        %s1472 = sand.u32 %s185, 1
        %s1473 = scalar_lea.sflag [#allocation5], %s1472
        %s1474 = sand.u32 %s185, 1
        %s1475 = smul.addr %s1474, 16
        %s1476 = scalar_lea.vmem [#allocation4], %s1475
        %s1477 = sand.u32 %s211, 1
        %s1478 = scalar_lea.sflag [#allocation7], %s1477
        %s1479 = sand.u32 %s211, 1
        %s1480 = smul.addr %s1479, 16
        %s1481 = scalar_lea.vmem [#allocation6], %s1480
        // Predicated region
        $region61: #{tpu_custom_call.1} parent=43 // pred_check
          %p1482 = pneg %p195
        $region62: #{tpu_custom_call.1} parent=43 // pred_check_branch
          %1484 = sbr.rel (%p1482) target = $region64
        $region63: #{tpu_custom_call.1} parent=43 // pred_region
          %s1485 = smul.u32 2, %s30
          %s1487 = ssub.s32 256, 256
          %1488 = vsyncadd %s1473, %s1487
          %s1489 = smul.addr %s29, 2
          %s1490 = sadd.s32 %s1485, %s1489
          %s1491 = smul.addr %s1490, 128
          %s1492 = scalar_lea.hbm %s6, %s1491
          %s1494 = sshll.u32 %s1476, 4
          %s1495 = int_to_ptr.vmem [resolvable:$true] %s1494
          %1497 = dma.vmem_to_hbm [thread:$0]  %s1495, 256, %s1492, %s1473
        $region64: #{tpu_custom_call.1} parent=43 // pred_fallthru
          _
        // Predicated region
        $region65: #{tpu_custom_call.1} parent=43 // pred_check
          %p1498 = pneg %p221
        $region66: #{tpu_custom_call.1} parent=43 // pred_check_branch
          %1500 = sbr.rel (%p1498) target = $region68
        $region67: #{tpu_custom_call.1} parent=43 // pred_region
          %s1502 = ssub.s32 256, 256
          %1503 = vsyncadd %s1478, %s1502
          %s1504 = smul.addr %s29, 2
          %s1505 = smul.addr %s1504, 128
          %s1506 = scalar_lea.hbm %s7, %s1505
          %s1508 = sshll.u32 %s1481, 4
          %s1509 = int_to_ptr.vmem [resolvable:$true] %s1508
          %1511 = dma.vmem_to_hbm [thread:$0]  %s1509, 256, %s1506, %s1478
        $region68: #{tpu_custom_call.1} parent=43 // pred_fallthru
          _
      $region44: #{tpu_custom_call.1} parent=5 // pred_fallthru
        _
      %p1512 = scmp.le.s32.totalorder 2, %s20
      // Predicated region
      $region69: #{tpu_custom_call.1} parent=5 // pred_check
        %p1513 = pneg %p1512
      $region70: #{tpu_custom_call.1} parent=5 // pred_check_branch
        %1515 = sbr.rel (%p1513) target = $region72
      $region71: #{tpu_custom_call.1} parent=5 // pred_region
        %s1516 = ssub.s32 %s20, 2
        // Predicated region
        $region73: #{tpu_custom_call.1} parent=71 // pred_check
          %p1517 = pneg %p201
        $region74: #{tpu_custom_call.1} parent=71 // pred_check_branch
          %1519 = sbr.rel (%p1517) target = $region76
        $region75: #{tpu_custom_call.1} parent=71 // pred_region
          %s1520 = sand.u32 %s186, 1
          %s1521 = scalar_lea.sflag [#allocation5], %s1520
          %s1522 = sand.u32 %s186, 1
          %s1523 = smul.addr %s1522, 16
          %s1524 = scalar_lea.vmem [#allocation4], %s1523
          %1525 = dma.done %s1521, 256
        $region76: #{tpu_custom_call.1} parent=71 // pred_fallthru
          _
        // Predicated region
        $region77: #{tpu_custom_call.1} parent=71 // pred_check
          %p1526 = pneg %p227
        $region78: #{tpu_custom_call.1} parent=71 // pred_check_branch
          %1528 = sbr.rel (%p1526) target = $region80
        $region79: #{tpu_custom_call.1} parent=71 // pred_region
          %s1529 = sand.u32 %s212, 1
          %s1530 = scalar_lea.sflag [#allocation7], %s1529
          %s1531 = sand.u32 %s212, 1
          %s1532 = smul.addr %s1531, 16
          %s1533 = scalar_lea.vmem [#allocation6], %s1532
          %1534 = dma.done %s1530, 256
        $region80: #{tpu_custom_call.1} parent=71 // pred_fallthru
          _
      $region72: #{tpu_custom_call.1} parent=5 // pred_fallthru
        _
    $region6: #{tpu_custom_call.1} parent=1 // loop_footer
      %s24 = sadd.s32 1, %s20
    $region7: #{tpu_custom_call.1} parent=1 // loop_footer_branch
      %19 = sbr.rel target = $region3
    $region8: #{tpu_custom_call.1} parent=1 // loop_exit
      _
    %1535 = vsyncpa [#allocation5], 1
    %s1536 = scalar_lea.sflag [#allocation5], 1
    %1537 = vsyncpa %s1536, 1
    %1538 = vsyncpa [#allocation7], 1
    %s1539 = scalar_lea.sflag [#allocation7], 1
    %1540 = vsyncpa %s1539, 1

</llo_original>
